<compile_context>
chip_gen: v7x
topology: tpu7x:2x2x1
jax: 0.10.0
libtpu: 0.0.40
codegen_flags: <defaults>
</compile_context>

<pallas_src>
import functools

import numpy as np
import jax
import jax.numpy as jnp
from jax.experimental import pallas as pl
from jax.experimental.pallas import tpu as pltpu


# ---------------------------------------------------------------------------
# Lanczos log-gamma (valid for z > 0.5, which always holds here since
# z = y_t + 1/alpha and alpha = 0.01 -> v = 100).  Uses only log/div/add/mul.
# ---------------------------------------------------------------------------
_LANCZOS_G = 7.0
_LANCZOS_COEF = (
    0.99999999999980993,
    676.5203681218851,
    -1259.1392167224028,
    771.32342877765313,
    -176.61502916214059,
    12.507343278686905,
    -0.13857109526572012,
    9.9843695780195716e-6,
    1.5056327351493116e-7,
)


def _lgamma(z):
    zm1 = z - 1.0
    x = jnp.full_like(zm1, _LANCZOS_COEF[0])
    for i in range(1, 9):
        x = x + _LANCZOS_COEF[i] / (zm1 + float(i))
    t = zm1 + _LANCZOS_G + 0.5
    return 0.5 * jnp.log(2.0 * jnp.pi) + (zm1 + 0.5) * jnp.log(t) - t + jnp.log(x)


def _cdiv(a, b):
    return -(-a // b)


def _round_up(a, b):
    return _cdiv(a, b) * b


# ---------------------------------------------------------------------------
# Pass 1: voxel-axis reduction.  grid = (num_splits [parallel], tiles [arbitrary]).
# Outputs are per-split lane-dense partial-sum blocks (8, TN); row 0 holds the
# running vector accumulators, rows 1..7 stay zero (block kept 8-sublane tall
# to respect the (8, 128) tiling rule).
# ---------------------------------------------------------------------------
def _reduce_kernel(n_valid, xt_ref, y_ref, beta_ref, mu_ref, ylog_ref):
    si = pl.program_id(0)
    ti = pl.program_id(1)
    tn = xt_ref.shape[1]

    @pl.when(ti == 0)
    def _():
        mu_ref[...] = jnp.zeros_like(mu_ref)
        ylog_ref[...] = jnp.zeros_like(ylog_ref)

    # Lane-dense hot path: (1, B) @ (B, TN) -> (1, TN) on the MXU.
    log_mu = jnp.dot(beta_ref[...], xt_ref[...],
                     preferred_element_type=jnp.float32)
    # Mask out zero-padded voxels (global column >= true N).
    col = ((si * pl.num_programs(1) + ti) * tn
           + jax.lax.broadcasted_iota(jnp.int32, (1, tn), 1))
    valid = col < n_valid
    mu_ref[0:1, :] = mu_ref[0:1, :] + jnp.where(valid, jnp.exp(log_mu), 0.0)
    ylog_ref[0:1, :] = ylog_ref[0:1, :] + jnp.where(valid, y_ref[...] * log_mu, 0.0)


# ---------------------------------------------------------------------------
# Pass 2: tiny study-level epilogue (runs once). Cross-lane reduce of the
# partial sums + all study-level terms of the clustered-NB log-likelihood.
# ---------------------------------------------------------------------------
def _epilogue_kernel(covariates, mu_ref, ylog_ref, zt_ref, yt_ref, gamma_ref,
                     alpha_ref, out_ref):
    m = yt_ref.shape[1]                                          # n_study (static)
    sum_mu = jnp.sum(mu_ref[...], keepdims=True)                 # (1, 1)
    sum_ylog = jnp.sum(ylog_ref[...], keepdims=True)             # (1, 1)

    # alpha comes from SMEM; broadcast to a lane vector before transcendentals.
    v = 1.0 / jnp.full((1, m), alpha_ref[0, 0], jnp.float32)     # (1, M)
    yt = yt_ref[...]                                             # (1, M)

    if covariates:
        # Z @ gamma as broadcast-mul + sublane reduce (Z passed transposed).
        log_mu_z = jnp.sum(zt_ref[...] * gamma_ref[...],
                           axis=0, keepdims=True)                # (1, M)
    else:
        log_mu_z = jnp.zeros((1, m), jnp.float32)
    mu_z = jnp.exp(log_mu_z)
    mu_t = sum_mu * mu_z                                         # (1, M)

    log_l = (jnp.sum(v * jnp.log(v), keepdims=True)              # == M * v * log(v)
             - jnp.sum(_lgamma(v), keepdims=True)                # == M * lgamma(v)
             + jnp.sum(_lgamma(yt + v), keepdims=True)
             - jnp.sum((yt + v) * jnp.log(mu_t + v), keepdims=True)
             + sum_ylog
             + jnp.sum(yt * log_mu_z, keepdims=True))
    out_ref[...] = -log_l                                        # forward returns -l


# ---------------------------------------------------------------------------
# Wrapper.
# ---------------------------------------------------------------------------
@functools.partial(jax.jit,
                   static_argnames=("covariates", "tile_n", "num_splits"))
def glm_clustered_nb_neg_loglik(X, y, Z, y_t, beta_col, gamma_row, alpha,
                                covariates=True, tile_n=8192, num_splits=2):
    f32 = jnp.float32
    N, beta_dim = X.shape
    n_study, gamma_dim = Z.shape

    # ---- layout plumbing (lane-dense: voxels / studies on lanes) ----------
    xt = X.astype(f32).T                              # (beta_dim, N)
    y_row = y.astype(f32).reshape(1, N)               # (1, N)
    beta_row = beta_col.astype(f32).reshape(1, beta_dim)
    zt = Z.astype(f32).T                              # (gamma_dim, n_study)
    yt_row = y_t.astype(f32).reshape(1, n_study)      # (1, n_study)
    gamma_colv = gamma_row.astype(f32).reshape(gamma_dim, 1)
    alpha11 = jnp.reshape(alpha, (1, 1)).astype(f32)

    # ---- tiling: biggest lane-aligned tile, cdiv grid, zero padding --------
    tn = min(_round_up(tile_n, 128), _round_up(N, 128))
    t_total = _cdiv(N, tn)
    s = max(1, min(num_splits, t_total))              # voxel-axis splits (v7x: 2 TCs)
    t_per = _cdiv(t_total, s)
    n_pad = s * t_per * tn
    if n_pad != N:
        xt = jnp.pad(xt, ((0, 0), (0, n_pad - N)))
        y_row = jnp.pad(y_row, ((0, 0), (0, n_pad - N)))

    # ---- pass 1: memory-bound voxel reduction ------------------------------
    mu_part, ylog_part = pl.pallas_call(
        functools.partial(_reduce_kernel, N),
        out_shape=(jax.ShapeDtypeStruct((s * 8, tn), f32),
                   jax.ShapeDtypeStruct((s * 8, tn), f32)),
        grid_spec=pltpu.PrefetchScalarGridSpec(
            num_scalar_prefetch=0,
            grid=(s, t_per),
            in_specs=[
                pl.BlockSpec((beta_dim, tn), lambda si, ti: (0, si * t_per + ti)),
                pl.BlockSpec((1, tn), lambda si, ti: (0, si * t_per + ti)),
                pl.BlockSpec((1, beta_dim), lambda si, ti: (0, 0)),
            ],
            out_specs=(
                pl.BlockSpec((8, tn), lambda si, ti: (si, 0)),
                pl.BlockSpec((8, tn), lambda si, ti: (si, 0)),
            ),
        ),
        compiler_params=pltpu.CompilerParams(
            dimension_semantics=("parallel", "arbitrary")),
    )(xt, y_row, beta_row)

    # ---- pass 2: tiny study-level epilogue (one invocation) ----------------
    out = pl.pallas_call(
        functools.partial(_epilogue_kernel, covariates),
        out_shape=jax.ShapeDtypeStruct((1, 1), f32),
        grid_spec=pltpu.PrefetchScalarGridSpec(
            num_scalar_prefetch=0,
            grid=(1,),
            in_specs=[
                pl.BlockSpec((s * 8, tn), lambda i: (0, 0)),
                pl.BlockSpec((s * 8, tn), lambda i: (0, 0)),
                pl.BlockSpec((gamma_dim, n_study), lambda i: (0, 0)),
                pl.BlockSpec((1, n_study), lambda i: (0, 0)),
                pl.BlockSpec((gamma_dim, 1), lambda i: (0, 0)),
                pl.BlockSpec(memory_space=pltpu.MemorySpace.SMEM),   # alpha (1,1)
            ],
            out_specs=pl.BlockSpec((1, 1), lambda i: (0, 0)),
        ),
    )(mu_part, ylog_part, zt, yt_row, gamma_colv, alpha11)
    return out.reshape(())


# ---------------------------------------------------------------------------
# Pure-JAX reference (mirrors the PyTorch forward, penalty='No').
# ---------------------------------------------------------------------------
def _reference(X, y, Z, y_t, beta_col, gamma_row, alpha, covariates):
    from jax.scipy.special import gammaln
    f32 = jnp.float32
    X = X.astype(f32); y = y.astype(f32); Z = Z.astype(f32); y_t = y_t.astype(f32)
    beta_col = beta_col.astype(f32); gamma_row = gamma_row.astype(f32)
    v = 1.0 / alpha
    log_mu_X = X @ beta_col
    mu_X = jnp.exp(log_mu_X)
    M = y_t.shape[0]
    if covariates:
        log_mu_Z = Z @ gamma_row.T
    else:
        log_mu_Z = jnp.zeros((M, 1), f32)
    mu_Z = jnp.exp(log_mu_Z)
    mu_t = jnp.sum(mu_X) * mu_Z
    log_l = (M * v * jnp.log(v)
             - M * gammaln(v)
             + jnp.sum(gammaln(y_t + v))
             - jnp.sum((y_t + v) * jnp.log(mu_t + v))
             + jnp.sum(y * log_mu_X)
             + jnp.sum(y_t * log_mu_Z))
    return -log_l


if __name__ == "__main__":
    key = jax.random.PRNGKey(0)
    # Deliberately N not a multiple of the tile to exercise cdiv + masking.
    N, beta_dim = 2000, 32          # voxels, spatial-basis dim
    n_study, gamma_dim = 8, 4       # studies, covariate dim
    k1, k2, k3, k4, k5, k6 = jax.random.split(key, 6)

    X = jax.random.normal(k1, (N, beta_dim), jnp.float32)
    y = jax.random.randint(k2, (N, 1), 0, 5).astype(jnp.float32)
    Z = jax.random.normal(k3, (n_study, gamma_dim), jnp.float32)
    y_t = jax.random.randint(k4, (n_study, 1), 1, 50).astype(jnp.float32)

    # Parameters matching the torch __init__ ranges.
    beta_w = jax.random.uniform(k5, (1, beta_dim), jnp.float32, -0.01, 0.01)
    gamma_w = jax.random.uniform(k6, (1, gamma_dim), jnp.float32, -0.1, 0.1)
    alpha = jnp.float32(0.01)
    beta_col = beta_w.T                                           # (beta_dim, 1)

    out = glm_clustered_nb_neg_loglik(X, y, Z, y_t, beta_col, gamma_w, alpha,
                                      covariates=True, tile_n=512, num_splits=2)
    out = jax.block_until_ready(out)

    ref = _reference(X, y, Z, y_t, beta_col, gamma_w, alpha, covariates=True)
    assert np.allclose(np.asarray(out), np.asarray(ref), rtol=1e-4, atol=1e-2), (out, ref)
    print("KERNEL_OK")
</pallas_src>

<mosaic_0001>
module attributes {stable_mosaic.version = 11 : i64} {
  func.func @_reduce_kernel(%arg0: i32, %arg1: i32, %arg2: memref<32x512xf32, #tpu.memory_space<vmem>>, %arg3: memref<1x512xf32, #tpu.memory_space<vmem>>, %arg4: memref<1x32xf32, #tpu.memory_space<vmem>>, %arg5: memref<8x512xf32, #tpu.memory_space<vmem>>, %arg6: memref<8x512xf32, #tpu.memory_space<vmem>>) attributes {dimension_semantics = [#tpu.dimension_semantics<parallel>, #tpu.dimension_semantics<arbitrary>], iteration_bounds = array<i64: 2, 2>, scalar_prefetch = 0 : i64, scratch_operands = 0 : i64, tpu.core_type = #tpu.core_type<tc>, window_params = [{transform_indices = @transform_0, window_bounds = array<i64: 32, 512>}, {transform_indices = @transform_1, window_bounds = array<i64: 1, 512>}, {pipeline_mode = #tpu.pipeline_mode<synchronous>, transform_indices = @transform_2, window_bounds = array<i64: 1, 32>}, {transform_indices = @transform_3, window_bounds = array<i64: 8, 512>}, {transform_indices = @transform_4, window_bounds = array<i64: 8, 512>}]} {
    %c0_i32 = arith.constant 0 : i32
    %0 = arith.cmpi eq, %arg1, %c0_i32 : i32
    %1 = arith.extui %0 : i1 to i32
    %c0_i32_0 = arith.constant 0 : i32
    %2 = arith.cmpi ne, %1, %c0_i32_0 : i32
    scf.if %2 {
      %cst_16 = arith.constant 0.000000e+00 : f32
      %27 = vector.broadcast %cst_16 : f32 to vector<8x512xf32>
      %c0_17 = arith.constant 0 : index
      %c0_18 = arith.constant 0 : index
      %28 = vector.load %arg5[%c0_17, %c0_18] : memref<8x512xf32, #tpu.memory_space<vmem>>, vector<8x512xf32>
      tpu.vector_store %arg5[%c0_17, %c0_18], %27 {strides = array<i32>} : memref<8x512xf32, #tpu.memory_space<vmem>>, vector<8x512xf32>,
      %cst_19 = arith.constant 0.000000e+00 : f32
      %29 = vector.broadcast %cst_19 : f32 to vector<8x512xf32>
      %c0_20 = arith.constant 0 : index
      %c0_21 = arith.constant 0 : index
      %30 = vector.load %arg6[%c0_20, %c0_21] : memref<8x512xf32, #tpu.memory_space<vmem>>, vector<8x512xf32>
      tpu.vector_store %arg6[%c0_20, %c0_21], %29 {strides = array<i32>} : memref<8x512xf32, #tpu.memory_space<vmem>>, vector<8x512xf32>,
    } else {
    }
    %c0 = arith.constant 0 : index
    %c0_1 = arith.constant 0 : index
    %3 = vector.load %arg4[%c0, %c0_1] : memref<1x32xf32, #tpu.memory_space<vmem>>, vector<1x32xf32>
    %c0_2 = arith.constant 0 : index
    %c0_3 = arith.constant 0 : index
    %4 = vector.load %arg2[%c0_2, %c0_3] : memref<32x512xf32, #tpu.memory_space<vmem>>, vector<32x512xf32>
    %cst = arith.constant dense<0.000000e+00> : vector<1x512xf32>
    %5 = tpu.matmul %3, %4, %cst {dimension_numbers = #tpu.dot_dimension_numbers<[1], [0], [0], [1], [0, 0, 1, 1], [], []>} : vector<1x32xf32>, vector<32x512xf32>, vector<1x512xf32> -> vector<1x512xf32>
    %c2_i32 = arith.constant 2 : i32
    %6 = arith.muli %arg0, %c2_i32 : i32
    %7 = arith.addi %6, %arg1 : i32
    %c512_i32 = arith.constant 512 : i32
    %8 = arith.muli %7, %c512_i32 : i32
    %9 = tpu.iota {dimensions = array<i32: 1>} : vector<1x512xi32>
    %10 = vector.broadcast %8 : i32 to vector<1x512xi32>
    %11 = arith.addi %10, %9 : vector<1x512xi32>
    %c2000_i32 = arith.constant 2000 : i32
    %12 = vector.broadcast %c2000_i32 : i32 to vector<1x512xi32>
    %13 = arith.cmpi slt, %11, %12 : vector<1x512xi32>
    %c0_4 = arith.constant 0 : index
    %c0_5 = arith.constant 0 : index
    %14 = vector.load %arg5[%c0_4, %c0_5] : memref<8x512xf32, #tpu.memory_space<vmem>>, vector<1x512xf32>
    %15 = math.exp %5 : vector<1x512xf32>
    %cst_6 = arith.constant 0.000000e+00 : f32
    %16 = vector.broadcast %cst_6 : f32 to vector<1x512xf32>
    %17 = arith.select %13, %15, %16 : vector<1x512xi1>, vector<1x512xf32>
    %18 = arith.addf %14, %17 : vector<1x512xf32>
    %c0_7 = arith.constant 0 : index
    %c0_8 = arith.constant 0 : index
    %19 = vector.load %arg5[%c0_7, %c0_8] : memref<8x512xf32, #tpu.memory_space<vmem>>, vector<1x512xf32>
    tpu.vector_store %arg5[%c0_7, %c0_8], %18 {strides = array<i32>} : memref<8x512xf32, #tpu.memory_space<vmem>>, vector<1x512xf32>,
    %c0_9 = arith.constant 0 : index
    %c0_10 = arith.constant 0 : index
    %20 = vector.load %arg6[%c0_9, %c0_10] : memref<8x512xf32, #tpu.memory_space<vmem>>, vector<1x512xf32>
    %c0_11 = arith.constant 0 : index
    %c0_12 = arith.constant 0 : index
    %21 = vector.load %arg3[%c0_11, %c0_12] : memref<1x512xf32, #tpu.memory_space<vmem>>, vector<1x512xf32>
    %22 = arith.mulf %21, %5 : vector<1x512xf32>
    %cst_13 = arith.constant 0.000000e+00 : f32
    %23 = vector.broadcast %cst_13 : f32 to vector<1x512xf32>
    %24 = arith.select %13, %22, %23 : vector<1x512xi1>, vector<1x512xf32>
    %25 = arith.addf %20, %24 : vector<1x512xf32>
    %c0_14 = arith.constant 0 : index
    %c0_15 = arith.constant 0 : index
    %26 = vector.load %arg6[%c0_14, %c0_15] : memref<8x512xf32, #tpu.memory_space<vmem>>, vector<1x512xf32>
    tpu.vector_store %arg6[%c0_14, %c0_15], %25 {strides = array<i32>} : memref<8x512xf32, #tpu.memory_space<vmem>>, vector<1x512xf32>,
    return
  }
  func.func @transform_0(%arg0: i32, %arg1: i32) -> (i32, i32) {
    %c2_i32 = arith.constant 2 : i32
    %0 = arith.muli %arg0, %c2_i32 : i32
    %1 = arith.addi %0, %arg1 : i32
    %c0_i32 = arith.constant 0 : i32
    %c0_i32_0 = arith.constant 0 : i32
    return %c0_i32, %1 : i32, i32
  }
  func.func @transform_1(%arg0: i32, %arg1: i32) -> (i32, i32) {
    %c2_i32 = arith.constant 2 : i32
    %0 = arith.muli %arg0, %c2_i32 : i32
    %1 = arith.addi %0, %arg1 : i32
    %c0_i32 = arith.constant 0 : i32
    %c0_i32_0 = arith.constant 0 : i32
    return %c0_i32, %1 : i32, i32
  }
  func.func @transform_2(%arg0: i32, %arg1: i32) -> (i32, i32) {
    %c0_i32 = arith.constant 0 : i32
    %c0_i32_0 = arith.constant 0 : i32
    %c0_i32_1 = arith.constant 0 : i32
    return %c0_i32, %c0_i32_0 : i32, i32
  }
  func.func @transform_3(%arg0: i32, %arg1: i32) -> (i32, i32) {
    %c0_i32 = arith.constant 0 : i32
    %c0_i32_0 = arith.constant 0 : i32
    return %arg0, %c0_i32 : i32, i32
  }
  func.func @transform_4(%arg0: i32, %arg1: i32) -> (i32, i32) {
    %c0_i32 = arith.constant 0 : i32
    %c0_i32_0 = arith.constant 0 : i32
    return %arg0, %c0_i32 : i32, i32
  }
}

module attributes {stable_mosaic.version = 11 : i64} {
  func.func @_epilogue_kernel(%arg0: i32, %arg1: memref<16x512xf32, #tpu.memory_space<vmem>>, %arg2: memref<16x512xf32, #tpu.memory_space<vmem>>, %arg3: memref<4x8xf32, #tpu.memory_space<vmem>>, %arg4: memref<1x8xf32, #tpu.memory_space<vmem>>, %arg5: memref<4x1xf32, #tpu.memory_space<vmem>>, %arg6: memref<1x1xf32, #tpu.memory_space<smem>>, %arg7: memref<1x1xf32, #tpu.memory_space<vmem>>) attributes {dimension_semantics = [#tpu.dimension_semantics<arbitrary>], iteration_bounds = array<i64: 1>, scalar_prefetch = 0 : i64, scratch_operands = 0 : i64, tpu.core_type = #tpu.core_type<tc>, window_params = [{pipeline_mode = #tpu.pipeline_mode<synchronous>, transform_indices = @transform_0, window_bounds = array<i64: 16, 512>}, {pipeline_mode = #tpu.pipeline_mode<synchronous>, transform_indices = @transform_1, window_bounds = array<i64: 16, 512>}, {pipeline_mode = #tpu.pipeline_mode<synchronous>, transform_indices = @transform_2, window_bounds = array<i64: 4, 8>}, {pipeline_mode = #tpu.pipeline_mode<synchronous>, transform_indices = @transform_3, window_bounds = array<i64: 1, 8>}, {pipeline_mode = #tpu.pipeline_mode<synchronous>, transform_indices = @transform_4, window_bounds = array<i64: 4, 1>}, {transform_indices = @transform_5, window_bounds = array<i64: 1, 1>}, {pipeline_mode = #tpu.pipeline_mode<synchronous>, transform_indices = @transform_6, window_bounds = array<i64: 1, 1>}]} {
    %c0 = arith.constant 0 : index
    %c0_0 = arith.constant 0 : index
    %0 = vector.load %arg1[%c0, %c0_0] : memref<16x512xf32, #tpu.memory_space<vmem>>, vector<16x512xf32>
    %1 = vector.shape_cast %0 : vector<16x512xf32> to vector<1x16x512xf32>
    %cst = arith.constant dense<0.000000e+00> : vector<1xf32>
    %2 = vector.multi_reduction <add>, %1, %cst [1, 2] : vector<1x16x512xf32> to vector<1xf32>
    %3 = vector.shape_cast %2 : vector<1xf32> to vector<1x1x1xf32>
    %4 = vector.extract %3[0, 0, 0] : f32 from vector<1x1x1xf32>
    %5 = vector.broadcast %4 : f32 to vector<1x1xf32>
    %c0_1 = arith.constant 0 : index
    %c0_2 = arith.constant 0 : index
    %6 = vector.load %arg2[%c0_1, %c0_2] : memref<16x512xf32, #tpu.memory_space<vmem>>, vector<16x512xf32>
    %7 = vector.shape_cast %6 : vector<16x512xf32> to vector<1x16x512xf32>
    %cst_3 = arith.constant dense<0.000000e+00> : vector<1xf32>
    %8 = vector.multi_reduction <add>, %7, %cst_3 [1, 2] : vector<1x16x512xf32> to vector<1xf32>
    %9 = vector.shape_cast %8 : vector<1xf32> to vector<1x1x1xf32>
    %10 = vector.extract %9[0, 0, 0] : f32 from vector<1x1x1xf32>
    %11 = vector.broadcast %10 : f32 to vector<1x1xf32>
    %c0_4 = arith.constant 0 : index
    %c0_5 = arith.constant 0 : index
    %12 = memref.load %arg6[%c0_4, %c0_5] : memref<1x1xf32, #tpu.memory_space<smem>>
    %13 = vector.broadcast %12 : f32 to vector<1x8xf32>
    %cst_6 = arith.constant 1.000000e+00 : f32
    %14 = vector.broadcast %cst_6 : f32 to vector<1x8xf32>
    %15 = arith.divf %14, %13 : vector<1x8xf32>
    %c0_7 = arith.constant 0 : index
    %c0_8 = arith.constant 0 : index
    %16 = vector.load %arg4[%c0_7, %c0_8] : memref<1x8xf32, #tpu.memory_space<vmem>>, vector<1x8xf32>
    %c0_9 = arith.constant 0 : index
    %c0_10 = arith.constant 0 : index
    %17 = vector.load %arg3[%c0_9, %c0_10] : memref<4x8xf32, #tpu.memory_space<vmem>>, vector<4x8xf32>
    %c0_11 = arith.constant 0 : index
    %c0_12 = arith.constant 0 : index
    %18 = vector.load %arg5[%c0_11, %c0_12] : memref<4x1xf32, #tpu.memory_space<vmem>>, vector<4x1xf32>
    %19 = vector.broadcast %18 : vector<4x1xf32> to vector<4x8xf32>
    %20 = arith.mulf %17, %19 : vector<4x8xf32>
    %cst_13 = arith.constant dense<0.000000e+00> : vector<8xf32>
    %21 = vector.multi_reduction <add>, %20, %cst_13 [0] : vector<4x8xf32> to vector<8xf32>
    %22 = vector.shape_cast %21 : vector<8xf32> to vector<1x8xf32>
    %23 = math.exp %22 : vector<1x8xf32>
    %24 = vector.broadcast %5 : vector<1x1xf32> to vector<1x8xf32>
    %25 = arith.mulf %24, %23 : vector<1x8xf32>
    %26 = math.log %15 : vector<1x8xf32>
    %27 = arith.mulf %15, %26 : vector<1x8xf32>
    %28 = vector.shape_cast %27 : vector<1x8xf32> to vector<1x1x8xf32>
    %cst_14 = arith.constant dense<0.000000e+00> : vector<1xf32>
    %29 = vector.multi_reduction <add>, %28, %cst_14 [1, 2] : vector<1x1x8xf32> to vector<1xf32>
    %30 = vector.shape_cast %29 : vector<1xf32> to vector<1x1x1xf32>
    %31 = vector.extract %30[0, 0, 0] : f32 from vector<1x1x1xf32>
    %32 = vector.broadcast %31 : f32 to vector<1x1xf32>
    %cst_15 = arith.constant 1.000000e+00 : f32
    %33 = vector.broadcast %cst_15 : f32 to vector<1x8xf32>
    %34 = arith.subf %15, %33 : vector<1x8xf32>
    %cst_16 = arith.constant 1.000000e+00 : f32
    %35 = vector.broadcast %cst_16 : f32 to vector<1x8xf32>
    %cst_17 = arith.constant 1.000000e+00 : f32
    %36 = vector.broadcast %cst_17 : f32 to vector<1x8xf32>
    %37 = arith.addf %34, %36 : vector<1x8xf32>
    %cst_18 = arith.constant 676.520386 : f32
    %38 = vector.broadcast %cst_18 : f32 to vector<1x8xf32>
    %39 = arith.divf %38, %37 : vector<1x8xf32>
    %40 = arith.addf %35, %39 : vector<1x8xf32>
    %cst_19 = arith.constant 2.000000e+00 : f32
    %41 = vector.broadcast %cst_19 : f32 to vector<1x8xf32>
    %42 = arith.addf %34, %41 : vector<1x8xf32>
    %cst_20 = arith.constant -1259.13916 : f32
    %43 = vector.broadcast %cst_20 : f32 to vector<1x8xf32>
    %44 = arith.divf %43, %42 : vector<1x8xf32>
    %45 = arith.addf %40, %44 : vector<1x8xf32>
    %cst_21 = arith.constant 3.000000e+00 : f32
    %46 = vector.broadcast %cst_21 : f32 to vector<1x8xf32>
    %47 = arith.addf %34, %46 : vector<1x8xf32>
    %cst_22 = arith.constant 771.323425 : f32
    %48 = vector.broadcast %cst_22 : f32 to vector<1x8xf32>
    %49 = arith.divf %48, %47 : vector<1x8xf32>
    %50 = arith.addf %45, %49 : vector<1x8xf32>
    %cst_23 = arith.constant 4.000000e+00 : f32
    %51 = vector.broadcast %cst_23 : f32 to vector<1x8xf32>
    %52 = arith.addf %34, %51 : vector<1x8xf32>
    %cst_24 = arith.constant -176.615036 : f32
    %53 = vector.broadcast %cst_24 : f32 to vector<1x8xf32>
    %54 = arith.divf %53, %52 : vector<1x8xf32>
    %55 = arith.addf %50, %54 : vector<1x8xf32>
    %cst_25 = arith.constant 5.000000e+00 : f32
    %56 = vector.broadcast %cst_25 : f32 to vector<1x8xf32>
    %57 = arith.addf %34, %56 : vector<1x8xf32>
    %cst_26 = arith.constant 12.5073433 : f32
    %58 = vector.broadcast %cst_26 : f32 to vector<1x8xf32>
    %59 = arith.divf %58, %57 : vector<1x8xf32>
    %60 = arith.addf %55, %59 : vector<1x8xf32>
    %cst_27 = arith.constant 6.000000e+00 : f32
    %61 = vector.broadcast %cst_27 : f32 to vector<1x8xf32>
    %62 = arith.addf %34, %61 : vector<1x8xf32>
    %cst_28 = arith.constant -0.138571098 : f32
    %63 = vector.broadcast %cst_28 : f32 to vector<1x8xf32>
    %64 = arith.divf %63, %62 : vector<1x8xf32>
    %65 = arith.addf %60, %64 : vector<1x8xf32>
    %cst_29 = arith.constant 7.000000e+00 : f32
    %66 = vector.broadcast %cst_29 : f32 to vector<1x8xf32>
    %67 = arith.addf %34, %66 : vector<1x8xf32>
    %cst_30 = arith.constant 9.98436917E-6 : f32
    %68 = vector.broadcast %cst_30 : f32 to vector<1x8xf32>
    %69 = arith.divf %68, %67 : vector<1x8xf32>
    %70 = arith.addf %65, %69 : vector<1x8xf32>
    %cst_31 = arith.constant 8.000000e+00 : f32
    %71 = vector.broadcast %cst_31 : f32 to vector<1x8xf32>
    %72 = arith.addf %34, %71 : vector<1x8xf32>
    %cst_32 = arith.constant 1.50563267E-7 : f32
    %73 = vector.broadcast %cst_32 : f32 to vector<1x8xf32>
    %74 = arith.divf %73, %72 : vector<1x8xf32>
    %75 = arith.addf %70, %74 : vector<1x8xf32>
    %cst_33 = arith.constant 7.000000e+00 : f32
    %76 = vector.broadcast %cst_33 : f32 to vector<1x8xf32>
    %77 = arith.addf %34, %76 : vector<1x8xf32>
    %cst_34 = arith.constant 5.000000e-01 : f32
    %78 = vector.broadcast %cst_34 : f32 to vector<1x8xf32>
    %79 = arith.addf %77, %78 : vector<1x8xf32>
    %cst_35 = arith.constant 6.28318548 : f32
    %80 = math.log %cst_35 : f32
    %cst_36 = arith.constant 5.000000e-01 : f32
    %81 = arith.mulf %cst_36, %80 : f32
    %cst_37 = arith.constant 5.000000e-01 : f32
    %82 = vector.broadcast %cst_37 : f32 to vector<1x8xf32>
    %83 = arith.addf %34, %82 : vector<1x8xf32>
    %84 = math.log %79 : vector<1x8xf32>
    %85 = arith.mulf %83, %84 : vector<1x8xf32>
    %86 = vector.broadcast %81 : f32 to vector<1x8xf32>
    %87 = arith.addf %86, %85 : vector<1x8xf32>
    %88 = arith.subf %87, %79 : vector<1x8xf32>
    %89 = math.log %75 : vector<1x8xf32>
    %90 = arith.addf %88, %89 : vector<1x8xf32>
    %91 = vector.shape_cast %90 : vector<1x8xf32> to vector<1x1x8xf32>
    %cst_38 = arith.constant dense<0.000000e+00> : vector<1xf32>
    %92 = vector.multi_reduction <add>, %91, %cst_38 [1, 2] : vector<1x1x8xf32> to vector<1xf32>
    %93 = vector.shape_cast %92 : vector<1xf32> to vector<1x1x1xf32>
    %94 = vector.extract %93[0, 0, 0] : f32 from vector<1x1x1xf32>
    %95 = vector.broadcast %94 : f32 to vector<1x1xf32>
    %96 = arith.subf %32, %95 : vector<1x1xf32>
    %97 = arith.addf %16, %15 : vector<1x8xf32>
    %cst_39 = arith.constant 1.000000e+00 : f32
    %98 = vector.broadcast %cst_39 : f32 to vector<1x8xf32>
    %99 = arith.subf %97, %98 : vector<1x8xf32>
    %cst_40 = arith.constant 1.000000e+00 : f32
    %100 = vector.broadcast %cst_40 : f32 to vector<1x8xf32>
    %cst_41 = arith.constant 1.000000e+00 : f32
    %101 = vector.broadcast %cst_41 : f32 to vector<1x8xf32>
    %102 = arith.addf %99, %101 : vector<1x8xf32>
    %cst_42 = arith.constant 676.520386 : f32
    %103 = vector.broadcast %cst_42 : f32 to vector<1x8xf32>
    %104 = arith.divf %103, %102 : vector<1x8xf32>
    %105 = arith.addf %100, %104 : vector<1x8xf32>
    %cst_43 = arith.constant 2.000000e+00 : f32
    %106 = vector.broadcast %cst_43 : f32 to vector<1x8xf32>
    %107 = arith.addf %99, %106 : vector<1x8xf32>
    %cst_44 = arith.constant -1259.13916 : f32
    %108 = vector.broadcast %cst_44 : f32 to vector<1x8xf32>
    %109 = arith.divf %108, %107 : vector<1x8xf32>
    %110 = arith.addf %105, %109 : vector<1x8xf32>
    %cst_45 = arith.constant 3.000000e+00 : f32
    %111 = vector.broadcast %cst_45 : f32 to vector<1x8xf32>
    %112 = arith.addf %99, %111 : vector<1x8xf32>
    %cst_46 = arith.constant 771.323425 : f32
    %113 = vector.broadcast %cst_46 : f32 to vector<1x8xf32>
    %114 = arith.divf %113, %112 : vector<1x8xf32>
    %115 = arith.addf %110, %114 : vector<1x8xf32>
    %cst_47 = arith.constant 4.000000e+00 : f32
    %116 = vector.broadcast %cst_47 : f32 to vector<1x8xf32>
    %117 = arith.addf %99, %116 : vector<1x8xf32>
    %cst_48 = arith.constant -176.615036 : f32
    %118 = vector.broadcast %cst_48 : f32 to vector<1x8xf32>
    %119 = arith.divf %118, %117 : vector<1x8xf32>
    %120 = arith.addf %115, %119 : vector<1x8xf32>
    %cst_49 = arith.constant 5.000000e+00 : f32
    %121 = vector.broadcast %cst_49 : f32 to vector<1x8xf32>
    %122 = arith.addf %99, %121 : vector<1x8xf32>
    %cst_50 = arith.constant 12.5073433 : f32
    %123 = vector.broadcast %cst_50 : f32 to vector<1x8xf32>
    %124 = arith.divf %123, %122 : vector<1x8xf32>
    %125 = arith.addf %120, %124 : vector<1x8xf32>
    %cst_51 = arith.constant 6.000000e+00 : f32
    %126 = vector.broadcast %cst_51 : f32 to vector<1x8xf32>
    %127 = arith.addf %99, %126 : vector<1x8xf32>
    %cst_52 = arith.constant -0.138571098 : f32
    %128 = vector.broadcast %cst_52 : f32 to vector<1x8xf32>
    %129 = arith.divf %128, %127 : vector<1x8xf32>
    %130 = arith.addf %125, %129 : vector<1x8xf32>
    %cst_53 = arith.constant 7.000000e+00 : f32
    %131 = vector.broadcast %cst_53 : f32 to vector<1x8xf32>
    %132 = arith.addf %99, %131 : vector<1x8xf32>
    %cst_54 = arith.constant 9.98436917E-6 : f32
    %133 = vector.broadcast %cst_54 : f32 to vector<1x8xf32>
    %134 = arith.divf %133, %132 : vector<1x8xf32>
    %135 = arith.addf %130, %134 : vector<1x8xf32>
    %cst_55 = arith.constant 8.000000e+00 : f32
    %136 = vector.broadcast %cst_55 : f32 to vector<1x8xf32>
    %137 = arith.addf %99, %136 : vector<1x8xf32>
    %cst_56 = arith.constant 1.50563267E-7 : f32
    %138 = vector.broadcast %cst_56 : f32 to vector<1x8xf32>
    %139 = arith.divf %138, %137 : vector<1x8xf32>
    %140 = arith.addf %135, %139 : vector<1x8xf32>
    %cst_57 = arith.constant 7.000000e+00 : f32
    %141 = vector.broadcast %cst_57 : f32 to vector<1x8xf32>
    %142 = arith.addf %99, %141 : vector<1x8xf32>
    %cst_58 = arith.constant 5.000000e-01 : f32
    %143 = vector.broadcast %cst_58 : f32 to vector<1x8xf32>
    %144 = arith.addf %142, %143 : vector<1x8xf32>
    %cst_59 = arith.constant 6.28318548 : f32
    %145 = math.log %cst_59 : f32
    %cst_60 = arith.constant 5.000000e-01 : f32
    %146 = arith.mulf %cst_60, %145 : f32
    %cst_61 = arith.constant 5.000000e-01 : f32
    %147 = vector.broadcast %cst_61 : f32 to vector<1x8xf32>
    %148 = arith.addf %99, %147 : vector<1x8xf32>
    %149 = math.log %144 : vector<1x8xf32>
    %150 = arith.mulf %148, %149 : vector<1x8xf32>
    %151 = vector.broadcast %146 : f32 to vector<1x8xf32>
    %152 = arith.addf %151, %150 : vector<1x8xf32>
    %153 = arith.subf %152, %144 : vector<1x8xf32>
    %154 = math.log %140 : vector<1x8xf32>
    %155 = arith.addf %153, %154 : vector<1x8xf32>
    %156 = vector.shape_cast %155 : vector<1x8xf32> to vector<1x1x8xf32>
    %cst_62 = arith.constant dense<0.000000e+00> : vector<1xf32>
    %157 = vector.multi_reduction <add>, %156, %cst_62 [1, 2] : vector<1x1x8xf32> to vector<1xf32>
    %158 = vector.shape_cast %157 : vector<1xf32> to vector<1x1x1xf32>
    %159 = vector.extract %158[0, 0, 0] : f32 from vector<1x1x1xf32>
    %160 = vector.broadcast %159 : f32 to vector<1x1xf32>
    %161 = arith.addf %96, %160 : vector<1x1xf32>
    %162 = arith.addf %16, %15 : vector<1x8xf32>
    %163 = arith.addf %25, %15 : vector<1x8xf32>
    %164 = math.log %163 : vector<1x8xf32>
    %165 = arith.mulf %162, %164 : vector<1x8xf32>
    %166 = vector.shape_cast %165 : vector<1x8xf32> to vector<1x1x8xf32>
    %cst_63 = arith.constant dense<0.000000e+00> : vector<1xf32>
    %167 = vector.multi_reduction <add>, %166, %cst_63 [1, 2] : vector<1x1x8xf32> to vector<1xf32>
    %168 = vector.shape_cast %167 : vector<1xf32> to vector<1x1x1xf32>
    %169 = vector.extract %168[0, 0, 0] : f32 from vector<1x1x1xf32>
    %170 = vector.broadcast %169 : f32 to vector<1x1xf32>
    %171 = arith.subf %161, %170 : vector<1x1xf32>
    %172 = arith.addf %171, %11 : vector<1x1xf32>
    %173 = arith.mulf %16, %22 : vector<1x8xf32>
    %174 = vector.shape_cast %173 : vector<1x8xf32> to vector<1x1x8xf32>
    %cst_64 = arith.constant dense<0.000000e+00> : vector<1xf32>
    %175 = vector.multi_reduction <add>, %174, %cst_64 [1, 2] : vector<1x1x8xf32> to vector<1xf32>
    %176 = vector.shape_cast %175 : vector<1xf32> to vector<1x1x1xf32>
    %177 = vector.extract %176[0, 0, 0] : f32 from vector<1x1x1xf32>
    %178 = vector.broadcast %177 : f32 to vector<1x1xf32>
    %179 = arith.addf %172, %178 : vector<1x1xf32>
    %cst_65 = arith.constant 0.000000e+00 : f32
    %180 = vector.broadcast %cst_65 : f32 to vector<1x1xf32>
    %181 = arith.subf %180, %179 : vector<1x1xf32>
    %c0_66 = arith.constant 0 : index
    %c0_67 = arith.constant 0 : index
    %182 = vector.load %arg7[%c0_66, %c0_67] : memref<1x1xf32, #tpu.memory_space<vmem>>, vector<1x1xf32>
    tpu.vector_store %arg7[%c0_66, %c0_67], %181 {strides = array<i32>} : memref<1x1xf32, #tpu.memory_space<vmem>>, vector<1x1xf32>,
    return
  }
  func.func @transform_0(%arg0: i32) -> (i32, i32) {
    %c0_i32 = arith.constant 0 : i32
    %c0_i32_0 = arith.constant 0 : i32
    %c0_i32_1 = arith.constant 0 : i32
    return %c0_i32, %c0_i32_0 : i32, i32
  }
  func.func @transform_1(%arg0: i32) -> (i32, i32) {
    %c0_i32 = arith.constant 0 : i32
    %c0_i32_0 = arith.constant 0 : i32
    %c0_i32_1 = arith.constant 0 : i32
    return %c0_i32, %c0_i32_0 : i32, i32
  }
  func.func @transform_2(%arg0: i32) -> (i32, i32) {
    %c0_i32 = arith.constant 0 : i32
    %c0_i32_0 = arith.constant 0 : i32
    %c0_i32_1 = arith.constant 0 : i32
    return %c0_i32, %c0_i32_0 : i32, i32
  }
  func.func @transform_3(%arg0: i32) -> (i32, i32) {
    %c0_i32 = arith.constant 0 : i32
    %c0_i32_0 = arith.constant 0 : i32
    %c0_i32_1 = arith.constant 0 : i32
    return %c0_i32, %c0_i32_0 : i32, i32
  }
  func.func @transform_4(%arg0: i32) -> (i32, i32) {
    %c0_i32 = arith.constant 0 : i32
    %c0_i32_0 = arith.constant 0 : i32
    %c0_i32_1 = arith.constant 0 : i32
    return %c0_i32, %c0_i32_0 : i32, i32
  }
  func.func @transform_5(%arg0: i32) -> (i32, i32) {
    %c0_i32 = arith.constant 0 : i32
    %c0_i32_0 = arith.constant 0 : i32
    %c0_i32_1 = arith.constant 0 : i32
    return %c0_i32, %c0_i32_0 : i32, i32
  }
  func.func @transform_6(%arg0: i32) -> (i32, i32) {
    %c0_i32 = arith.constant 0 : i32
    %c0_i32_0 = arith.constant 0 : i32
    %c0_i32_1 = arith.constant 0 : i32
    return %c0_i32, %c0_i32_0 : i32, i32
  }
}

</mosaic_0001>

<llo_original>
// kernel: glm_clustered_nb_neg_loglik.2
$region0: #{glm_clustered_nb_neg_loglik.2}
  #allocation0 [shape = 'u32[]', space=smem, size = 0x4, offset = 0x4, fixed_abs, tag = 'smem constant byte address 0x4 - core index']
  #allocation1 [shape = 'u32[144,128]{1,0:T(1,128)}', space=vmem, size = 0x12000, scoped, tag = 'internal scratch']
  %s0 = inlined_call_operand.vmem [shape: f32[32,2048], index: 0, kind: input, shape index: {}]
  %s1 = inlined_call_operand.vmem [shape: f32[1,2048], index: 1, kind: input, shape index: {}]
  %s2 = inlined_call_operand.vmem [shape: f32[1,32], index: 2, kind: input, shape index: {}]
  %s3 = inlined_call_operand.vmem [shape: f32[16,512], index: 3, kind: output, shape index: {0}]
  %s4 = inlined_call_operand.vmem [shape: f32[16,512], index: 4, kind: output, shape index: {1}]
  %5 = xla_tuple %s3, %s4
  %s6 = sld [smem:[#allocation0]]
  $region80: #{glm_clustered_nb_neg_loglik.2} parent=0
    _
  %s8 = ssub.s32 1, %s6
  %s9 = scalar_select 0, %s8, %s6
  $region1: #{glm_clustered_nb_neg_loglik.2} parent=0
    #allocation2 [shape = 'u8[131072]{0}', space=vmem, size = 0x20000, scoped, tag = 'input window, operand 0']
    loop: start=0, step=1, limit=6
    $region2: #{glm_clustered_nb_neg_loglik.2} parent=1 // loop_pre_header
      _
    $region3: #{glm_clustered_nb_neg_loglik.2} parent=1 // loop_header
      %s11 = sphi 0, %s15
      %p12 = scmp.ge.s32.totalorder %s11, 6
      %s18 = sphi 0, %s30
      %s19 = sphi 0, %s26
      %s20 = sphi 0, %s18
      %s21 = sphi 0, %s19
      %s22 = sphi 0, %s20
      %s23 = sphi 0, %s21
      %s37 = sphi 0, %s39
      %s40 = sphi 0, %s37
      %s41 = sphi 0, %s40
      %s57 = sphi 0, %s41
      %s67 = sphi 0, %s69
      %s70 = sphi 0, %s67
      %s71 = sphi 0, %s70
      %s87 = sphi 0, %s71
      %s91 = sphi 0, %s91
      %s93 = sphi 0, %s91
      %s94 = sphi 0, %s93
      %s108 = sphi 0, %s94
      %s114 = sphi 0, %s116
      %s117 = sphi 0, %s114
      %s118 = sphi 0, %s117
      %s134 = sphi 0, %s118
      %s140 = sphi 0, %s142
      %s143 = sphi 0, %s140
      %s144 = sphi 0, %s143
      %s160 = sphi 0, %s144
    $region4: #{glm_clustered_nb_neg_loglik.2} parent=1 // loop_header_branch
      %14 = sbr.rel (%p12) target = $region8
    $region5: #{glm_clustered_nb_neg_loglik.2} parent=1 // loop_body
      %s16 = ssub.s32 %s11, 1
      %s17 = ssub.s32 %s11, 2
      %s24 = sadd.s32 1, %s19
      %p25 = scmp.ge.s32.totalorder %s24, 2
      %s26 = scalar_select %p25, 0, %s24
      %s27 = sadd.s32 1, %s18
      %s28 = scalar_select %p25, %s27, %s18
      %p29 = scmp.ge.s32.totalorder %s28, 2
      %s30 = scalar_select %p29, 0, %s28
      %s31 = smul.u32 %s18, 2
      %s32 = sadd.s32 %s31, %s19
      %s33 = smul.u32 %s30, 2
      %s34 = sadd.s32 %s33, %s26
      %s35 = ssub.s32 %s32, %s34
      %p36 = scmp.eq.s32.totalorder %s35, 0
      %s38 = sadd.s32 %s37, 1
      %s39 = scalar_select %p36, %s37, %s38
      %p42 = pneg %p36
      %p43 = scmp.eq.s32.totalorder %s11, 3
      %p44 = por %p42, %p43
      %p45 = scmp.ne.s32.totalorder %s37, %s40
      %p46 = scmp.eq.s32.totalorder %s11, 0
      %p47 = por %p45, %p46
      %p48 = scmp.ne.s32.totalorder %s37, %s40
      %p49 = scmp.eq.s32.totalorder %s16, 3
      %p50 = por %p48, %p49
      %p51 = scmp.ne.s32.totalorder %s40, %s41
      %p52 = scmp.eq.s32.totalorder %s16, 0
      %p53 = por %p51, %p52
      %p54 = scmp.ne.s32.totalorder %s40, %s41
      %p55 = scmp.eq.s32.totalorder %s17, 3
      %p56 = por %p54, %p55
      %p58 = scmp.ne.s32.totalorder %s41, %s57
      %p59 = scmp.eq.s32.totalorder %s17, 0
      %p60 = por %p58, %p59
      %s61 = smul.u32 %s18, 2
      %s62 = sadd.s32 %s61, %s19
      %s63 = smul.u32 %s30, 2
      %s64 = sadd.s32 %s63, %s26
      %s65 = ssub.s32 %s62, %s64
      %p66 = scmp.eq.s32.totalorder %s65, 0
      %s68 = sadd.s32 %s67, 1
      %s69 = scalar_select %p66, %s67, %s68
      %p72 = pneg %p66
      %p73 = scmp.eq.s32.totalorder %s11, 3
      %p74 = por %p72, %p73
      %p75 = scmp.ne.s32.totalorder %s67, %s70
      %p76 = scmp.eq.s32.totalorder %s11, 0
      %p77 = por %p75, %p76
      %p78 = scmp.ne.s32.totalorder %s67, %s70
      %p79 = scmp.eq.s32.totalorder %s16, 3
      %p80 = por %p78, %p79
      %p81 = scmp.ne.s32.totalorder %s70, %s71
      %p82 = scmp.eq.s32.totalorder %s16, 0
      %p83 = por %p81, %p82
      %p84 = scmp.ne.s32.totalorder %s70, %s71
      %p85 = scmp.eq.s32.totalorder %s17, 3
      %p86 = por %p84, %p85
      %p88 = scmp.ne.s32.totalorder %s71, %s87
      %p89 = scmp.eq.s32.totalorder %s17, 0
      %p90 = por %p88, %p89
      %s92 = sadd.s32 %s91, 1
      %p95 = scmp.eq.s32.totalorder %s11, 3
      %p96 = scmp.ne.s32.totalorder %s91, %s93
      %p97 = scmp.eq.s32.totalorder %s11, 0
      %p98 = por %p96, %p97
      %p99 = scmp.ne.s32.totalorder %s91, %s93
      %p100 = scmp.eq.s32.totalorder %s16, 3
      %p101 = por %p99, %p100
      %p102 = scmp.ne.s32.totalorder %s93, %s94
      %p103 = scmp.eq.s32.totalorder %s16, 0
      %p104 = por %p102, %p103
      %p105 = scmp.ne.s32.totalorder %s93, %s94
      %p106 = scmp.eq.s32.totalorder %s17, 3
      %p107 = por %p105, %p106
      %p109 = scmp.ne.s32.totalorder %s94, %s108
      %p110 = scmp.eq.s32.totalorder %s17, 0
      %p111 = por %p109, %p110
      %s112 = ssub.s32 %s18, %s30
      %p113 = scmp.eq.s32.totalorder %s112, 0
      %s115 = sadd.s32 %s114, 1
      %s116 = scalar_select %p113, %s114, %s115
      %p119 = pneg %p113
      %p120 = scmp.eq.s32.totalorder %s11, 3
      %p121 = por %p119, %p120
      %p122 = scmp.ne.s32.totalorder %s114, %s117
      %p123 = scmp.eq.s32.totalorder %s11, 0
      %p124 = por %p122, %p123
      %p125 = scmp.ne.s32.totalorder %s114, %s117
      %p126 = scmp.eq.s32.totalorder %s16, 3
      %p127 = por %p125, %p126
      %p128 = scmp.ne.s32.totalorder %s117, %s118
      %p129 = scmp.eq.s32.totalorder %s16, 0
      %p130 = por %p128, %p129
      %p131 = scmp.ne.s32.totalorder %s117, %s118
      %p132 = scmp.eq.s32.totalorder %s17, 3
      %p133 = por %p131, %p132
      %p135 = scmp.ne.s32.totalorder %s118, %s134
      %p136 = scmp.eq.s32.totalorder %s17, 0
      %p137 = por %p135, %p136
      %s138 = ssub.s32 %s18, %s30
      %p139 = scmp.eq.s32.totalorder %s138, 0
      %s141 = sadd.s32 %s140, 1
      %s142 = scalar_select %p139, %s140, %s141
      %p145 = pneg %p139
      %p146 = scmp.eq.s32.totalorder %s11, 3
      %p147 = por %p145, %p146
      %p148 = scmp.ne.s32.totalorder %s140, %s143
      %p149 = scmp.eq.s32.totalorder %s11, 0
      %p150 = por %p148, %p149
      %p151 = scmp.ne.s32.totalorder %s140, %s143
      %p152 = scmp.eq.s32.totalorder %s16, 3
      %p153 = por %p151, %p152
      %p154 = scmp.ne.s32.totalorder %s143, %s144
      %p155 = scmp.eq.s32.totalorder %s16, 0
      %p156 = por %p154, %p155
      %p157 = scmp.ne.s32.totalorder %s143, %s144
      %p158 = scmp.eq.s32.totalorder %s17, 3
      %p159 = por %p157, %p158
      %p161 = scmp.ne.s32.totalorder %s144, %s160
      %p162 = scmp.eq.s32.totalorder %s17, 0
      %p163 = por %p161, %p162
      %p164 = scmp.le.s32.totalorder 1, %s11
      %p165 = scmp.lt.s32.totalorder %s11, 5
      %p166 = pnand %p164, %p165
      %p167 = pneg %p166
      // Predicated region
      $region9: #{glm_clustered_nb_neg_loglik.2} parent=5 // pred_check
        _
      $region10: #{glm_clustered_nb_neg_loglik.2} parent=5 // pred_check_branch
        %169 = sbr.rel (%p166) target = $region12
      $region11: #{glm_clustered_nb_neg_loglik.2} parent=5 // pred_region
        %s170 = ssub.s32 %s11, 1
        // Predicated region
        $region13: #{glm_clustered_nb_neg_loglik.2} parent=11 // pred_check
          %p171 = pneg %p104
        $region14: #{glm_clustered_nb_neg_loglik.2} parent=11 // pred_check_branch
          %173 = sbr.rel (%p171) target = $region16
        $region15: #{glm_clustered_nb_neg_loglik.2} parent=11 // pred_region
          _
        $region16: #{glm_clustered_nb_neg_loglik.2} parent=11 // pred_fallthru
          _
      $region12: #{glm_clustered_nb_neg_loglik.2} parent=5 // pred_fallthru
        _
      %p174 = scmp.lt.s32.totalorder %s11, 4
      // Predicated region
      $region17: #{glm_clustered_nb_neg_loglik.2} parent=5 // pred_check
        %p175 = pneg %p174
      $region18: #{glm_clustered_nb_neg_loglik.2} parent=5 // pred_check_branch
        %177 = sbr.rel (%p175) target = $region20
      $region19: #{glm_clustered_nb_neg_loglik.2} parent=5 // pred_region
        // Predicated region
        $region21: #{glm_clustered_nb_neg_loglik.2} parent=19 // pred_check
          %p178 = pneg %p47
        $region22: #{glm_clustered_nb_neg_loglik.2} parent=19 // pred_check_branch
          %180 = sbr.rel (%p178) target = $region24
        $region23: #{glm_clustered_nb_neg_loglik.2} parent=19 // pred_region
          %s181 = sand.u32 %s37, 1
          %s182 = sand.u32 %s37, 1
          %s183 = smul.addr %s182, 128
          %s184 = scalar_lea.vmem [#allocation2], %s183
          %s185 = smul.u32 %s18, 2
          %s186 = sadd.s32 %s185, %s19
          %s187 = smul.u32 4, %s186
          %s188 = smul.addr %s187, 8
          %s189 = scalar_lea.vmem %s0, %s188
          // Predicated region
          $region25: #{glm_clustered_nb_neg_loglik.2} parent=23 // pred_check
            _
          $region26: #{glm_clustered_nb_neg_loglik.2} parent=23 // pred_check_branch
            %191 = sbr.rel (0) target = $region28
          $region27: #{glm_clustered_nb_neg_loglik.2} parent=23 // pred_region
            // Predicated region
            $region29: #{glm_clustered_nb_neg_loglik.2} parent=27 // pred_check
              _
            $region30: #{glm_clustered_nb_neg_loglik.2} parent=27 // pred_check_branch
              %193 = sbr.rel (0) target = $region32
            $region31: #{glm_clustered_nb_neg_loglik.2} parent=27 // pred_region
              loop: start=0, step=1, limit=1
              $region33: #{glm_clustered_nb_neg_loglik.2} parent=31 // loop_pre_header
                _
              $region34: #{glm_clustered_nb_neg_loglik.2} parent=31 // loop_header
                %s195 = sphi 0, %s199
                %p196 = scmp.ge.s32.totalorder %s195, 1
                %s200 = sphi %s189, %s189
                %s201 = sphi %s184, %s184
              $region35: #{glm_clustered_nb_neg_loglik.2} parent=31 // loop_header_branch
                %198 = sbr.rel (%p196) target = $region39
              $region36: #{glm_clustered_nb_neg_loglik.2} parent=31 // loop_body
                %v202 = vld [vmem:[%s200] sm:$0xff]
                %203 = vst [vmem:[%s201] sm:$0xff] %v202
                %v204 = vld [vmem:[%s200 + $0x8] sm:$0xff]
                %205 = vst [vmem:[%s201 + $0x8] sm:$0xff] %v204
                %v206 = vld [vmem:[%s200 + $0x10] sm:$0xff]
                %207 = vst [vmem:[%s201 + $0x10] sm:$0xff] %v206
                %v208 = vld [vmem:[%s200 + $0x18] sm:$0xff]
                %209 = vst [vmem:[%s201 + $0x18] sm:$0xff] %v208
                %v210 = vld [vmem:[%s200 + $0x80] sm:$0xff]
                %211 = vst [vmem:[%s201 + $0x20] sm:$0xff] %v210
                %v212 = vld [vmem:[%s200 + $0x88] sm:$0xff]
                %213 = vst [vmem:[%s201 + $0x28] sm:$0xff] %v212
                %v214 = vld [vmem:[%s200 + $0x90] sm:$0xff]
                %215 = vst [vmem:[%s201 + $0x30] sm:$0xff] %v214
                %v216 = vld [vmem:[%s200 + $0x98] sm:$0xff]
                %217 = vst [vmem:[%s201 + $0x38] sm:$0xff] %v216
                %v218 = vld [vmem:[%s200 + $0x100] sm:$0xff]
                %219 = vst [vmem:[%s201 + $0x40] sm:$0xff] %v218
                %v220 = vld [vmem:[%s200 + $0x108] sm:$0xff]
                %221 = vst [vmem:[%s201 + $0x48] sm:$0xff] %v220
                %v222 = vld [vmem:[%s200 + $0x110] sm:$0xff]
                %223 = vst [vmem:[%s201 + $0x50] sm:$0xff] %v222
                %v224 = vld [vmem:[%s200 + $0x118] sm:$0xff]
                %225 = vst [vmem:[%s201 + $0x58] sm:$0xff] %v224
                %v226 = vld [vmem:[%s200 + $0x180] sm:$0xff]
                %227 = vst [vmem:[%s201 + $0x60] sm:$0xff] %v226
                %v228 = vld [vmem:[%s200 + $0x188] sm:$0xff]
                %229 = vst [vmem:[%s201 + $0x68] sm:$0xff] %v228
                %v230 = vld [vmem:[%s200 + $0x190] sm:$0xff]
                %231 = vst [vmem:[%s201 + $0x70] sm:$0xff] %v230
                %v232 = vld [vmem:[%s200 + $0x198] sm:$0xff]
                %233 = vst [vmem:[%s201 + $0x78] sm:$0xff] %v232
              $region37: #{glm_clustered_nb_neg_loglik.2} parent=31 // loop_footer
                %s199 = sadd.s32 1, %s195
              $region38: #{glm_clustered_nb_neg_loglik.2} parent=31 // loop_footer_branch
                %194 = sbr.rel target = $region34
              $region39: #{glm_clustered_nb_neg_loglik.2} parent=31 // loop_exit
                _
            $region32: #{glm_clustered_nb_neg_loglik.2} parent=27 // pred_fallthru
              _
            // Predicated region
            $region40: #{glm_clustered_nb_neg_loglik.2} parent=27 // pred_check
              _
            $region41: #{glm_clustered_nb_neg_loglik.2} parent=27 // pred_check_branch
              %235 = sbr.rel target = $region43
            $region42: #{glm_clustered_nb_neg_loglik.2} parent=27 // pred_region
              _
            $region43: #{glm_clustered_nb_neg_loglik.2} parent=27 // pred_fallthru
              _
          $region28: #{glm_clustered_nb_neg_loglik.2} parent=23 // pred_fallthru
            _
          %236 = vnop
        $region24: #{glm_clustered_nb_neg_loglik.2} parent=19 // pred_fallthru
          _
        // Predicated region
        $region44: #{glm_clustered_nb_neg_loglik.2} parent=19 // pred_check
          %p237 = pneg %p77
        $region45: #{glm_clustered_nb_neg_loglik.2} parent=19 // pred_check_branch
          %239 = sbr.rel (%p237) target = $region47
        $region46: #{glm_clustered_nb_neg_loglik.2} parent=19 // pred_region
          %s240 = smul.u32 %s18, 2
          %s241 = sadd.s32 %s240, %s19
          %s242 = smul.u32 4, %s241
          %p243 = scmp.lt.s32.totalorder %s242, 15
          %s244 = scalar_select %p243, %s242, 15
          %s245 = scalar_lea.vmem %s1, %s244
          %s246 = smul.u32 %s18, 2
          %s247 = sadd.s32 %s246, %s19
          %s248 = smul.u32 4, %s247
        $region47: #{glm_clustered_nb_neg_loglik.2} parent=19 // pred_fallthru
          _
      $region20: #{glm_clustered_nb_neg_loglik.2} parent=5 // pred_fallthru
        _
      %p249 = scmp.le.s32.totalorder 1, %s11
      %p250 = scmp.lt.s32.totalorder %s11, 5
      %p251 = pnand %p249, %p250
      %p252 = pneg %p251
      // Predicated region
      $region48: #{glm_clustered_nb_neg_loglik.2} parent=5 // pred_check
        _
      $region49: #{glm_clustered_nb_neg_loglik.2} parent=5 // pred_check_branch
        %254 = sbr.rel (%p251) target = $region51
      $region50: #{glm_clustered_nb_neg_loglik.2} parent=5 // pred_region
        %s255 = ssub.s32 %s11, 1
        %s256 = sand.u32 %s40, 1
        %s257 = sand.u32 %s40, 1
        %s258 = smul.addr %s257, 128
        %s259 = scalar_lea.vmem [#allocation2], %s258
        // Predicated region
        $region52: #{glm_clustered_nb_neg_loglik.2} parent=50 // pred_check
          %p260 = pneg %p53
        $region53: #{glm_clustered_nb_neg_loglik.2} parent=50 // pred_check_branch
          %262 = sbr.rel (%p260) target = $region55
        $region54: #{glm_clustered_nb_neg_loglik.2} parent=50 // pred_region
          _
        $region55: #{glm_clustered_nb_neg_loglik.2} parent=50 // pred_fallthru
          _
        %s263 = sand.u32 %s40, 1
        %s264 = sand.u32 %s40, 1
        %s265 = smul.addr %s264, 128
        %s266 = scalar_lea.vmem [#allocation2], %s265
        %p267 = pneg %p53
        %p268 = pneg %p50
        %s269 = smul.u32 %s20, 2
        %s270 = sadd.s32 %s269, %s21
        %s271 = smul.u32 4, %s270
        %p272 = scmp.lt.s32.totalorder %s271, 15
        %s273 = scalar_select %p272, %s271, 15
        %s274 = scalar_lea.vmem %s1, %s273
        %p275 = pneg %p83
        %p276 = pneg %p80
        %p277 = pneg %p104
        %p278 = pneg %p101
        %p279 = pneg %p130
        %p280 = pneg %p127
        %p281 = scmp.lt.s32.totalorder %s20, 1
        %s282 = scalar_select %p281, %s20, 1
        %s283 = smul.addr %s282, 4
        %s284 = smul.addr %s283, 8
        %s285 = scalar_lea.vmem %s3, %s284
        %p286 = pneg %p156
        %p287 = pneg %p153
        %p288 = scmp.lt.s32.totalorder %s20, 1
        %s289 = scalar_select %p288, %s20, 1
        %s290 = smul.addr %s289, 4
        %s291 = smul.addr %s290, 8
        %s292 = scalar_lea.vmem %s4, %s291
        %s293 = smul.u32 %s20, 2
        %s294 = sadd.s32 %s293, %s21
        %s295 = smul.u32 4, %s294
        %s296 = smul.u32 %s20, 2
        %s297 = sadd.s32 %s296, %s21
        %s298 = smul.u32 4, %s297
        %p299 = scmp.lt.s32.totalorder %s298, 15
        %s300 = scalar_select %p299, %s298, 15
        %s301 = scalar_lea.vmem %s1, %s300
        %s302 = smul.u32 %s20, 2
        %s303 = sadd.s32 %s302, %s21
        %s304 = smul.u32 4, %s303
        %p305 = scmp.lt.s32.totalorder %s20, 1
        %s306 = scalar_select %p305, %s20, 1
        %s307 = smul.addr %s306, 4
        %s308 = smul.addr %s307, 8
        %s309 = scalar_lea.vmem %s3, %s308
        %p310 = scmp.lt.s32.totalorder %s20, 1
        %s311 = scalar_select %p310, %s20, 1
        %s312 = smul.addr %s311, 4
        %s313 = smul.addr %s312, 8
        %s314 = scalar_lea.vmem %s4, %s313
        %p315 = scmp.eq.s32.totalorder %s21, 0
        // Predicated region
        $region56: #{glm_clustered_nb_neg_loglik.2} parent=50 // pred_check
          %p316 = pneg %p315
        $region57: #{glm_clustered_nb_neg_loglik.2} parent=50 // pred_check_branch
          %318 = sbr.rel (%p316) target = $region59
        $region58: #{glm_clustered_nb_neg_loglik.2} parent=50 // pred_region
          %319 = vst [vmem:[%s309] sm:$0xff] 0.0
          %320 = vst [vmem:[%s309 + $0x8] sm:$0xff] 0.0
          %321 = vst [vmem:[%s309 + $0x10] sm:$0xff] 0.0
          %322 = vst [vmem:[%s309 + $0x18] sm:$0xff] 0.0
          %323 = vst [vmem:[%s314] sm:$0xff] 0.0
          %324 = vst [vmem:[%s314 + $0x8] sm:$0xff] 0.0
          %325 = vst [vmem:[%s314 + $0x10] sm:$0xff] 0.0
          %326 = vst [vmem:[%s314 + $0x18] sm:$0xff] 0.0
        $region59: #{glm_clustered_nb_neg_loglik.2} parent=50 // pred_fallthru
          _
        %v327 = vld [vmem:[%s2] sm:$0x1]
        %v328 = vld [vmem:[%s259] sm:$0xff]
        %v329 = vld [vmem:[%s259 + $0x8] sm:$0xff]
        %v330 = vld [vmem:[%s259 + $0x10] sm:$0xff]
        %v331 = vld [vmem:[%s259 + $0x18] sm:$0xff]
        %v332 = vld [vmem:[%s259 + $0x20] sm:$0xff]
        %v333 = vld [vmem:[%s259 + $0x28] sm:$0xff]
        %v334 = vld [vmem:[%s259 + $0x30] sm:$0xff]
        %v335 = vld [vmem:[%s259 + $0x38] sm:$0xff]
        %v336 = vld [vmem:[%s259 + $0x40] sm:$0xff]
        %v337 = vld [vmem:[%s259 + $0x48] sm:$0xff]
        %v338 = vld [vmem:[%s259 + $0x50] sm:$0xff]
        %v339 = vld [vmem:[%s259 + $0x58] sm:$0xff]
        %v340 = vld [vmem:[%s259 + $0x60] sm:$0xff]
        %v341 = vld [vmem:[%s259 + $0x68] sm:$0xff]
        %v342 = vld [vmem:[%s259 + $0x70] sm:$0xff]
        %v343 = vld [vmem:[%s259 + $0x78] sm:$0xff]
        %vm344 = vcmask 261120
        %v346 = vsel %vm344, %v327, 0
        %348 = vmatprep.subr.mxu0 %v329
        %349 = vmatpush1.msra.mxu0 %v328
        %350 = vmatprep.subr.mxu0 %v333
        %351 = vmatpush1.msra.mxu0 %v332
        %352 = vmatprep.subr.mxu0 %v337
        %353 = vmatpush1.msra.mxu0 %v336
        %354 = vmatprep.subr.mxu0 %v341
        %355 = vmatpush1.msra.mxu0 %v340
        %356 = vmatprep.subr.mxu0 0.0
        %357 = vmatpush1.msra.mxu0 0.0
        %358 = vmatprep.subr.mxu0 0.0
        %359 = vmatpush1.msra.mxu0 0.0
        %360 = vmatprep.subr.mxu0 0.0
        %361 = vmatpush1.msra.mxu0 0.0
        %362 = vmatprep.subr.mxu0 0.0
        %363 = vmatpush1.msra.mxu0 0.0
        %364 = vmatprep.subr.mxu0 0.0
        %365 = vmatpush1.msra.mxu0 0.0
        %366 = vmatprep.subr.mxu0 0.0
        %367 = vmatpush1.msra.mxu0 0.0
        %368 = vmatprep.subr.mxu0 0.0
        %369 = vmatpush1.msra.mxu0 0.0
        %370 = vmatprep.subr.mxu0 0.0
        %371 = vmatpush1.msra.mxu0 0.0
        %372 = vmatprep.subr.mxu0 0.0
        %373 = vmatpush1.msra.mxu0 0.0
        %374 = vmatprep.subr.mxu0 0.0
        %375 = vmatpush1.msra.mxu0 0.0
        %376 = vmatprep.subr.mxu0 0.0
        %377 = vmatpush1.msra.mxu0 0.0
        %378 = vmatprep.subr.mxu0 0.0
        %379 = vmatpush1.msra.mxu0 0.0
        %380 = vmatprep.subr.mxu0 0.0
        %381 = vmatpush1.msra.mxu0 0.0
        %382 = vmatprep.subr.mxu0 0.0
        %383 = vmatpush1.msra.mxu0 0.0
        %384 = vmatprep.subr.mxu0 0.0
        %385 = vmatpush1.msra.mxu0 0.0
        %386 = vmatprep.subr.mxu0 0.0
        %387 = vmatpush1.msra.mxu0 0.0
        %388 = vmatprep.subr.mxu0 0.0
        %389 = vmatpush1.msra.mxu0 0.0
        %390 = vmatprep.subr.mxu0 0.0
        %391 = vmatpush1.msra.mxu0 0.0
        %392 = vmatprep.subr.mxu0 0.0
        %393 = vmatpush1.msra.mxu0 0.0
        %394 = vmatprep.subr.mxu0 0.0
        %395 = vmatpush1.msra.mxu0 0.0
        %396 = vmatprep.subr.mxu0 0.0
        %397 = vmatpush1.msra.mxu0 0.0
        %398 = vmatprep.subr.mxu0 0.0
        %399 = vmatpush1.msra.mxu0 0.0
        %400 = vmatprep.subr.mxu0 0.0
        %401 = vmatpush1.msra.mxu0 0.0
        %402 = vmatprep.subr.mxu0 0.0
        %403 = vmatpush1.msra.mxu0 0.0
        %404 = vmatprep.subr.mxu0 0.0
        %405 = vmatpush1.msra.mxu0 0.0
        %406 = vmatprep.subr.mxu0 0.0
        %407 = vmatpush1.msra.mxu0 0.0
        %408 = vmatprep.subr.mxu0 0.0
        %409 = vmatpush1.msra.mxu0 0.0
        %410 = vmatprep.subr.mxu0 0.0
        %411 = vmatpush1.msra.mxu0 0.0
        %412 = vmatprep.mubr.f32.mxu0 0.0
        %413 = vmatmul.mubr.f32.gmra.mrb[0].mxu0 %v346
        %v414 = vpop.f32.mrb[0].mxu0
        %v415 = vadd.f32 0.0, %v414
        %v416 = vpop.f32.mrb[0].mxu0
        %v417 = vadd.f32 0.0, %v416
        %418 = vdwg.mxu0
        %419 = vmatprep.subr.mxu0 %v331
        %420 = vmatpush1.msra.mxu0 %v330
        %421 = vmatprep.subr.mxu0 %v335
        %422 = vmatpush1.msra.mxu0 %v334
        %423 = vmatprep.subr.mxu0 %v339
        %424 = vmatpush1.msra.mxu0 %v338
        %425 = vmatprep.subr.mxu0 %v343
        %426 = vmatpush1.msra.mxu0 %v342
        %427 = vmatprep.subr.mxu0 0.0
        %428 = vmatpush1.msra.mxu0 0.0
        %429 = vmatprep.subr.mxu0 0.0
        %430 = vmatpush1.msra.mxu0 0.0
        %431 = vmatprep.subr.mxu0 0.0
        %432 = vmatpush1.msra.mxu0 0.0
        %433 = vmatprep.subr.mxu0 0.0
        %434 = vmatpush1.msra.mxu0 0.0
        %435 = vmatprep.subr.mxu0 0.0
        %436 = vmatpush1.msra.mxu0 0.0
        %437 = vmatprep.subr.mxu0 0.0
        %438 = vmatpush1.msra.mxu0 0.0
        %439 = vmatprep.subr.mxu0 0.0
        %440 = vmatpush1.msra.mxu0 0.0
        %441 = vmatprep.subr.mxu0 0.0
        %442 = vmatpush1.msra.mxu0 0.0
        %443 = vmatprep.subr.mxu0 0.0
        %444 = vmatpush1.msra.mxu0 0.0
        %445 = vmatprep.subr.mxu0 0.0
        %446 = vmatpush1.msra.mxu0 0.0
        %447 = vmatprep.subr.mxu0 0.0
        %448 = vmatpush1.msra.mxu0 0.0
        %449 = vmatprep.subr.mxu0 0.0
        %450 = vmatpush1.msra.mxu0 0.0
        %451 = vmatprep.subr.mxu0 0.0
        %452 = vmatpush1.msra.mxu0 0.0
        %453 = vmatprep.subr.mxu0 0.0
        %454 = vmatpush1.msra.mxu0 0.0
        %455 = vmatprep.subr.mxu0 0.0
        %456 = vmatpush1.msra.mxu0 0.0
        %457 = vmatprep.subr.mxu0 0.0
        %458 = vmatpush1.msra.mxu0 0.0
        %459 = vmatprep.subr.mxu0 0.0
        %460 = vmatpush1.msra.mxu0 0.0
        %461 = vmatprep.subr.mxu0 0.0
        %462 = vmatpush1.msra.mxu0 0.0
        %463 = vmatprep.subr.mxu0 0.0
        %464 = vmatpush1.msra.mxu0 0.0
        %465 = vmatprep.subr.mxu0 0.0
        %466 = vmatpush1.msra.mxu0 0.0
        %467 = vmatprep.subr.mxu0 0.0
        %468 = vmatpush1.msra.mxu0 0.0
        %469 = vmatprep.subr.mxu0 0.0
        %470 = vmatpush1.msra.mxu0 0.0
        %471 = vmatprep.subr.mxu0 0.0
        %472 = vmatpush1.msra.mxu0 0.0
        %473 = vmatprep.subr.mxu0 0.0
        %474 = vmatpush1.msra.mxu0 0.0
        %475 = vmatprep.subr.mxu0 0.0
        %476 = vmatpush1.msra.mxu0 0.0
        %477 = vmatprep.subr.mxu0 0.0
        %478 = vmatpush1.msra.mxu0 0.0
        %479 = vmatprep.subr.mxu0 0.0
        %480 = vmatpush1.msra.mxu0 0.0
        %481 = vmatprep.subr.mxu0 0.0
        %482 = vmatpush1.msra.mxu0 0.0
        %483 = vmatprep.mubr.f32.mxu0 0.0
        %484 = vmatmul.mubr.f32.gmra.mrb[0].mxu0 %v346
        %v485 = vpop.f32.mrb[0].mxu0
        %v486 = vadd.f32 0.0, %v485
        %v487 = vpop.f32.mrb[0].mxu0
        %v488 = vadd.f32 0.0, %v487
        %489 = vdwg.mxu0
        %s490 = smul.u32 %s20, 2
        %s491 = sadd.s32 %s490, %s21
        %s492 = smul.u32 %s491, 512
        %v493 = vlaneseq
        %v494 = vand.u32 %v493, 127
        %v495 = vadd.s32 %v494, 128
        %v496 = vadd.s32 %v494, 256
        %v497 = vadd.s32 %v494, 384
        %v498 = vstv %s492
        %v499 = vadd.s32 %v498, %v494
        %v500 = vadd.s32 %v498, %v495
        %v501 = vadd.s32 %v498, %v496
        %v502 = vadd.s32 %v498, %v497
        %vm503 = vcmp.lt.s32.totalorder %v499, 2000
        %vm504 = vcmp.lt.s32.totalorder %v500, 2000
        %vm505 = vcmp.lt.s32.totalorder %v501, 2000
        %vm506 = vcmp.lt.s32.totalorder %v502, 2000
        %v507 = vld [vmem:[%s309] ss:$8 sm:$0xf]
        %v508 = vmul.f32 %v415, 1.442695
        %v509 = vpow.pop %v508
        %v510 = vmul.f32 %v417, 1.442695
        %v511 = vpow.pop %v510
        %v512 = vmul.f32 %v486, 1.442695
        %v513 = vpow.pop %v512
        %v514 = vmul.f32 %v488, 1.442695
        %v515 = vpow.pop %v514
        %v516 = vsel %vm503, %v509, 0.0
        %v517 = vsel %vm504, %v511, 0.0
        %v518 = vsel %vm505, %v513, 0.0
        %v519 = vsel %vm506, %v515, 0.0
        %v524 = vcombine.low %v516, %v517
        %v525 = vcombine.low %v518, %v519
        %v527 = vunpack.c.l.s4 1966171168
        %v528 = vunpack.c.0.s8 %v527
        %v529 = vlaneseq
        %v530 = vshrl.u32 %v529, 7
        %v531 = vsub.s32 %v528, %v530
        %v532 = vrot.slane %v524, %v531
        %v534 = vunpack.c.l.s4 1966171168
        %v535 = vunpack.c.0.s8 %v534
        %v536 = vlaneseq
        %v537 = vshrl.u32 %v536, 7
        %v538 = vsub.s32 %v535, %v537
        %v539 = vrot.slane %v525, %v538
        %v540 = vcombine.low %v532, %v539
        %v542 = vunpack.c.l.s4 1966171168
        %v543 = vunpack.c.0.s8 %v542
        %v544 = vlaneseq
        %v545 = vshrl.u32 %v544, 7
        %v546 = vsub.s32 %v543, %v545
        %v547 = vrot.slane %v540, %v546
        %v549 = vadd.f32 %v507, %v547
        %v550 = vlaneseq
        %vm551 = vcmp.ge.s32.totalorder %v550, 0
        %vm552 = vcmp.lt.s32.totalorder %v550, 512
        %vm553 = vmand %vm551, %vm552
        %554 = vst.msk [vmem:[%s309] ss:$8 sm:$0xf] %vm553, %v549
        %555 = vst.msk [vmem:[%s309] ss:$8 sm:$0x0] %vm553, %v549
        %v556 = vld [vmem:[%s314] ss:$8 sm:$0xf]
        %v557 = vld [vmem:[%s301] sm:$0xf]
        %v562 = vcombine.low %v415, %v417
        %v563 = vcombine.low %v486, %v488
        %v565 = vunpack.c.l.s4 1966171168
        %v566 = vunpack.c.0.s8 %v565
        %v567 = vlaneseq
        %v568 = vshrl.u32 %v567, 7
        %v569 = vsub.s32 %v566, %v568
        %v570 = vrot.slane %v562, %v569
        %v572 = vunpack.c.l.s4 1966171168
        %v573 = vunpack.c.0.s8 %v572
        %v574 = vlaneseq
        %v575 = vshrl.u32 %v574, 7
        %v576 = vsub.s32 %v573, %v575
        %v577 = vrot.slane %v563, %v576
        %v578 = vcombine.low %v570, %v577
        %v580 = vunpack.c.l.s4 1966171168
        %v581 = vunpack.c.0.s8 %v580
        %v582 = vlaneseq
        %v583 = vshrl.u32 %v582, 7
        %v584 = vsub.s32 %v581, %v583
        %v585 = vrot.slane %v578, %v584
        %v587 = vmul.f32 %v557, %v585
        %v589 = vlaneseq
        %v590 = vshrl.u32 %v589, 7
        %v591 = vsub.s32 0, %v590
        %v592 = vrot.slane %v587, %v591
        %v593 = vlaneseq
        %v594 = vshrl.u32 %v593, 7
        %v595 = vsub.s32 1, %v594
        %v596 = vrot.slane %v587, %v595
        %v597 = vlaneseq
        %v598 = vshrl.u32 %v597, 7
        %v599 = vsub.s32 2, %v598
        %v600 = vrot.slane %v587, %v599
        %v601 = vlaneseq
        %v602 = vshrl.u32 %v601, 7
        %v603 = vsub.s32 3, %v602
        %v604 = vrot.slane %v587, %v603
        %v609 = vsel %vm503, %v592, 0.0
        %v610 = vsel %vm504, %v596, 0.0
        %v611 = vsel %vm505, %v600, 0.0
        %v612 = vsel %vm506, %v604, 0.0
        %v617 = vcombine.low %v609, %v610
        %v618 = vcombine.low %v611, %v612
        %v620 = vunpack.c.l.s4 1966171168
        %v621 = vunpack.c.0.s8 %v620
        %v622 = vlaneseq
        %v623 = vshrl.u32 %v622, 7
        %v624 = vsub.s32 %v621, %v623
        %v625 = vrot.slane %v617, %v624
        %v627 = vunpack.c.l.s4 1966171168
        %v628 = vunpack.c.0.s8 %v627
        %v629 = vlaneseq
        %v630 = vshrl.u32 %v629, 7
        %v631 = vsub.s32 %v628, %v630
        %v632 = vrot.slane %v618, %v631
        %v633 = vcombine.low %v625, %v632
        %v635 = vunpack.c.l.s4 1966171168
        %v636 = vunpack.c.0.s8 %v635
        %v637 = vlaneseq
        %v638 = vshrl.u32 %v637, 7
        %v639 = vsub.s32 %v636, %v638
        %v640 = vrot.slane %v633, %v639
        %v642 = vadd.f32 %v556, %v640
        %643 = vst.msk [vmem:[%s314] ss:$8 sm:$0xf] %vm553, %v642
        %644 = vst.msk [vmem:[%s314] ss:$8 sm:$0x0] %vm553, %v642
        %p645 = scmp.lt.s32.totalorder %s20, 1
        %s646 = scalar_select %p645, %s20, 1
        %s647 = smul.addr %s646, 4
        %s648 = smul.addr %s647, 8
        %s649 = scalar_lea.vmem %s3, %s648
        %p650 = scmp.lt.s32.totalorder %s20, 1
        %s651 = scalar_select %p650, %s20, 1
        %s652 = smul.addr %s651, 4
        %s653 = smul.addr %s652, 8
        %s654 = scalar_lea.vmem %s4, %s653
        // Predicated region
        $region60: #{glm_clustered_nb_neg_loglik.2} parent=50 // pred_check
          %p655 = pneg %p127
        $region61: #{glm_clustered_nb_neg_loglik.2} parent=50 // pred_check_branch
          %657 = sbr.rel (%p655) target = $region63
        $region62: #{glm_clustered_nb_neg_loglik.2} parent=50 // pred_region
          _
        $region63: #{glm_clustered_nb_neg_loglik.2} parent=50 // pred_fallthru
          _
        // Predicated region
        $region64: #{glm_clustered_nb_neg_loglik.2} parent=50 // pred_check
          %p658 = pneg %p153
        $region65: #{glm_clustered_nb_neg_loglik.2} parent=50 // pred_check_branch
          %660 = sbr.rel (%p658) target = $region67
        $region66: #{glm_clustered_nb_neg_loglik.2} parent=50 // pred_region
          _
        $region67: #{glm_clustered_nb_neg_loglik.2} parent=50 // pred_fallthru
          _
      $region51: #{glm_clustered_nb_neg_loglik.2} parent=5 // pred_fallthru
        _
      %p661 = scmp.le.s32.totalorder 2, %s11
      // Predicated region
      $region68: #{glm_clustered_nb_neg_loglik.2} parent=5 // pred_check
        %p662 = pneg %p661
      $region69: #{glm_clustered_nb_neg_loglik.2} parent=5 // pred_check_branch
        %664 = sbr.rel (%p662) target = $region71
      $region70: #{glm_clustered_nb_neg_loglik.2} parent=5 // pred_region
        %s665 = ssub.s32 %s11, 2
        // Predicated region
        $region72: #{glm_clustered_nb_neg_loglik.2} parent=70 // pred_check
          %p666 = pneg %p133
        $region73: #{glm_clustered_nb_neg_loglik.2} parent=70 // pred_check_branch
          %668 = sbr.rel (%p666) target = $region75
        $region74: #{glm_clustered_nb_neg_loglik.2} parent=70 // pred_region
          %p669 = scmp.lt.s32.totalorder %s22, 1
          %s670 = scalar_select %p669, %s22, 1
          %s671 = smul.addr %s670, 4
          %s672 = smul.addr %s671, 8
          %s673 = scalar_lea.vmem %s3, %s672
        $region75: #{glm_clustered_nb_neg_loglik.2} parent=70 // pred_fallthru
          _
        // Predicated region
        $region76: #{glm_clustered_nb_neg_loglik.2} parent=70 // pred_check
          %p674 = pneg %p159
        $region77: #{glm_clustered_nb_neg_loglik.2} parent=70 // pred_check_branch
          %676 = sbr.rel (%p674) target = $region79
        $region78: #{glm_clustered_nb_neg_loglik.2} parent=70 // pred_region
          %p677 = scmp.lt.s32.totalorder %s22, 1
          %s678 = scalar_select %p677, %s22, 1
          %s679 = smul.addr %s678, 4
          %s680 = smul.addr %s679, 8
          %s681 = scalar_lea.vmem %s4, %s680
        $region79: #{glm_clustered_nb_neg_loglik.2} parent=70 // pred_fallthru
          _
      $region71: #{glm_clustered_nb_neg_loglik.2} parent=5 // pred_fallthru
        _
    $region6: #{glm_clustered_nb_neg_loglik.2} parent=1 // loop_footer
      %s15 = sadd.s32 1, %s11
    $region7: #{glm_clustered_nb_neg_loglik.2} parent=1 // loop_footer_branch
      %10 = sbr.rel target = $region3
    $region8: #{glm_clustered_nb_neg_loglik.2} parent=1 // loop_exit
      _

// kernel: glm_clustered_nb_neg_loglik.3
$region0: #{glm_clustered_nb_neg_loglik.3}
  #allocation0 [shape = 'u32[]', space=smem, size = 0x4, offset = 0x4, fixed_abs, tag = 'smem constant byte address 0x4 - core index']
  #allocation1 [shape = 'u32[144,128]{1,0:T(1,128)}', space=vmem, size = 0x12000, scoped, tag = 'internal scratch']
  #allocation2 [shape = 'f32[1,1]{1,0:T(1,128)S(6)}', space=smem, size = 0x200, scoped, tag = 'scoped memory for glm_clustered_nb_neg_loglik.3']
  %s0 = inlined_call_operand.vmem [shape: f32[16,512], index: 0, kind: input, shape index: {}]
  %s1 = inlined_call_operand.vmem [shape: f32[16,512], index: 1, kind: input, shape index: {}]
  %s2 = inlined_call_operand.vmem [shape: f32[4,8], index: 2, kind: input, shape index: {}]
  %s3 = inlined_call_operand.vmem [shape: f32[1,8], index: 3, kind: input, shape index: {}]
  %s4 = inlined_call_operand.vmem [shape: f32[4,1], index: 4, kind: input, shape index: {}]
  %s5 = inlined_call_operand.<no memory space> [shape: f32[1,1], index: 5, kind: input, shape index: {}]
  %s6 = inlined_call_operand.hbm [shape: f32[1,1], index: 6, kind: output, shape index: {}]
  %s7 = sld [smem:[#allocation0]]
  $region34: #{glm_clustered_nb_neg_loglik.3} parent=0
    _
  %s9 = ssub.s32 1, %s7
  %s10 = scalar_select 0, %s9, %s7
  %11 = sst [smem:[#allocation2]] %s5
  $region1: #{glm_clustered_nb_neg_loglik.3} parent=0
    #allocation3 [shape = 'u8[512]{0}', space=vmem, size = 0x400, scoped, tag = 'output window, operand 0, single buffered']
    #allocation4 [shape = 's32[1]{0}', space=sflag, size = 0x4, scoped, tag = 'scoped memory for glm_clustered_nb_neg_loglik.3']
    %12 = vsyncpa [#allocation4], 0
    // Predicated region
    $region2: #{glm_clustered_nb_neg_loglik.3} parent=1 // pred_check
      _
    $region3: #{glm_clustered_nb_neg_loglik.3} parent=1 // pred_check_branch
      %14 = sbr.rel (0) target = $region5
    $region4: #{glm_clustered_nb_neg_loglik.3} parent=1 // pred_region
      _
    $region5: #{glm_clustered_nb_neg_loglik.3} parent=1 // pred_fallthru
      _
    // Predicated region
    $region6: #{glm_clustered_nb_neg_loglik.3} parent=1 // pred_check
      _
    $region7: #{glm_clustered_nb_neg_loglik.3} parent=1 // pred_check_branch
      %16 = sbr.rel (0) target = $region9
    $region8: #{glm_clustered_nb_neg_loglik.3} parent=1 // pred_region
      _
    $region9: #{glm_clustered_nb_neg_loglik.3} parent=1 // pred_fallthru
      _
    // Predicated region
    $region10: #{glm_clustered_nb_neg_loglik.3} parent=1 // pred_check
      _
    $region11: #{glm_clustered_nb_neg_loglik.3} parent=1 // pred_check_branch
      %18 = sbr.rel (0) target = $region13
    $region12: #{glm_clustered_nb_neg_loglik.3} parent=1 // pred_region
      _
    $region13: #{glm_clustered_nb_neg_loglik.3} parent=1 // pred_fallthru
      _
    // Predicated region
    $region14: #{glm_clustered_nb_neg_loglik.3} parent=1 // pred_check
      _
    $region15: #{glm_clustered_nb_neg_loglik.3} parent=1 // pred_check_branch
      %20 = sbr.rel (0) target = $region17
    $region16: #{glm_clustered_nb_neg_loglik.3} parent=1 // pred_region
      _
    $region17: #{glm_clustered_nb_neg_loglik.3} parent=1 // pred_fallthru
      _
    // Predicated region
    $region18: #{glm_clustered_nb_neg_loglik.3} parent=1 // pred_check
      _
    $region19: #{glm_clustered_nb_neg_loglik.3} parent=1 // pred_check_branch
      %22 = sbr.rel (0) target = $region21
    $region20: #{glm_clustered_nb_neg_loglik.3} parent=1 // pred_region
      _
    $region21: #{glm_clustered_nb_neg_loglik.3} parent=1 // pred_fallthru
      _
    // Predicated region
    $region22: #{glm_clustered_nb_neg_loglik.3} parent=1 // pred_check
      _
    $region23: #{glm_clustered_nb_neg_loglik.3} parent=1 // pred_check_branch
      %24 = sbr.rel (0) target = $region25
    $region24: #{glm_clustered_nb_neg_loglik.3} parent=1 // pred_region
      _
    $region25: #{glm_clustered_nb_neg_loglik.3} parent=1 // pred_fallthru
      _
    %v25 = vld [vmem:[%s0] sm:$0xff]
    %v26 = vld [vmem:[%s0 + $0x8] sm:$0xff]
    %v27 = vld [vmem:[%s0 + $0x10] sm:$0xff]
    %v28 = vld [vmem:[%s0 + $0x18] sm:$0xff]
    %v29 = vld [vmem:[%s0 + $0x20] sm:$0xff]
    %v30 = vld [vmem:[%s0 + $0x28] sm:$0xff]
    %v31 = vld [vmem:[%s0 + $0x30] sm:$0xff]
    %v32 = vld [vmem:[%s0 + $0x38] sm:$0xff]
    %v33 = vadd.f32 %v25, %v26
    %v34 = vadd.f32 %v33, %v27
    %v35 = vadd.f32 %v34, %v28
    %v36 = vadd.f32 %v35, %v29
    %v37 = vadd.f32 %v36, %v30
    %v38 = vadd.f32 %v37, %v31
    %v39 = vadd.f32 %v38, %v32
    %40 = vadd.xlane.f32.xlu0 %v39
    %v41 = vpop.xlane.xlu0 %40
    %v42 = vrot.slane %v41, 4
    %v43 = vadd.f32 %v41, %v42
    %v44 = vrot.slane %v43, 2
    %v45 = vadd.f32 %v43, %v44
    %v46 = vrot.slane %v45, 1
    %v47 = vadd.f32 %v45, %v46
    %s48 = vtos %v47
    %v49 = vld [vmem:[%s1] sm:$0xff]
    %v50 = vld [vmem:[%s1 + $0x8] sm:$0xff]
    %v51 = vld [vmem:[%s1 + $0x10] sm:$0xff]
    %v52 = vld [vmem:[%s1 + $0x18] sm:$0xff]
    %v53 = vld [vmem:[%s1 + $0x20] sm:$0xff]
    %v54 = vld [vmem:[%s1 + $0x28] sm:$0xff]
    %v55 = vld [vmem:[%s1 + $0x30] sm:$0xff]
    %v56 = vld [vmem:[%s1 + $0x38] sm:$0xff]
    %v57 = vadd.f32 %v49, %v50
    %v58 = vadd.f32 %v57, %v51
    %v59 = vadd.f32 %v58, %v52
    %v60 = vadd.f32 %v59, %v53
    %v61 = vadd.f32 %v60, %v54
    %v62 = vadd.f32 %v61, %v55
    %v63 = vadd.f32 %v62, %v56
    %64 = vadd.xlane.f32.xlu0 %v63
    %v65 = vpop.xlane.xlu0 %64
    %v66 = vrot.slane %v65, 4
    %v67 = vadd.f32 %v65, %v66
    %v68 = vrot.slane %v67, 2
    %v69 = vadd.f32 %v67, %v68
    %v70 = vrot.slane %v69, 1
    %v71 = vadd.f32 %v69, %v70
    %s72 = vtos %v71
    %v73 = vstv %s72
    %s74 = sld [smem:[#allocation2]]
    %v75 = vstv %s74
    %v76 = vrcp.pop %v75
    %v77 = vmul.f32 1.0, %v76
    %v78 = vld [vmem:[%s3] sm:$0x1]
    %v79 = vld [vmem:[%s2] sm:$0xf]
    %v80 = vld [vmem:[%s4] sm:$0xf]
    %82 = vset.pattern.permute.xlu0 0
    %83 = vperm.xlu0 %82, %v80
    %v84 = vpop.permute.xlu0 %83
    %v86 = vmul.f32 %v79, %v84
    %vm87 = vcmask 60416
    %v88 = vsel %vm87, %v86, 0.0
    %v89 = vrot.slane %v88, 4
    %v90 = vadd.f32 %v88, %v89
    %v91 = vrot.slane %v90, 2
    %v92 = vadd.f32 %v90, %v91
    %v93 = vrot.slane %v92, 1
    %v94 = vadd.f32 %v92, %v93
    %v95 = vmul.f32 %v94, 1.442695
    %v96 = vpow.pop %v95
    %v97 = vstv %s48
    %v98 = vmul.f32 %v97, %v96
    %v99 = vlog2.pop %v77
    %v100 = vmul.f32 %v99, 0.6931472
    %v101 = vmul.f32 %v77, %v100
    %vm102 = vcmask 57344
    %v103 = vsel %vm102, %v101, 0.0
    %104 = vadd.xlane.f32.xlu0 %v103
    %v105 = vpop.xlane.xlu0 %104
    %v106 = vrot.slane %v105, 4
    %v107 = vadd.f32 %v105, %v106
    %v108 = vrot.slane %v107, 2
    %v109 = vadd.f32 %v107, %v108
    %v110 = vrot.slane %v109, 1
    %v111 = vadd.f32 %v109, %v110
    %s112 = vtos %v111
    %v113 = vstv %s112
    %v114 = vsub.f32 %v77, 1.0
    %v115 = vadd.f32 %v114, 1.0
    %v116 = vrcp.pop %v115
    %v117 = vmul.f32 676.5204, %v116
    %v118 = vadd.f32 %v117, 1.0
    %v119 = vadd.f32 %v114, 2.0
    %v120 = vrcp.pop %v119
    %v121 = vmul.f32 -1259.1392, %v120
    %v122 = vadd.f32 %v118, %v121
    %v123 = vadd.f32 %v114, 3.0
    %v124 = vrcp.pop %v123
    %v125 = vmul.f32 771.3234, %v124
    %v126 = vadd.f32 %v122, %v125
    %v127 = vadd.f32 %v114, 4.0
    %v128 = vrcp.pop %v127
    %v129 = vmul.f32 -176.61504, %v128
    %v130 = vadd.f32 %v126, %v129
    %v131 = vadd.f32 %v114, 5.0
    %v132 = vrcp.pop %v131
    %v133 = vmul.f32 12.507343, %v132
    %v134 = vadd.f32 %v130, %v133
    %v135 = vadd.f32 %v114, 6.0
    %v136 = vrcp.pop %v135
    %v137 = vmul.f32 -0.1385711, %v136
    %v138 = vadd.f32 %v134, %v137
    %v139 = vadd.f32 %v114, 7.0
    %v140 = vrcp.pop %v139
    %v141 = vmul.f32 9.984369e-06, %v140
    %v142 = vadd.f32 %v138, %v141
    %v143 = vadd.f32 %v114, 8.0
    %v144 = vrcp.pop %v143
    %v145 = vmul.f32 1.5056327e-07, %v144
    %v146 = vadd.f32 %v142, %v145
    %v147 = vadd.f32 %v139, 0.5
    %v148 = vadd.f32 %v114, 0.5
    %v149 = vlog2.pop %v147
    %v150 = vmul.f32 %v149, 0.6931472
    %v151 = vmul.f32 %v148, %v150
    %v152 = vadd.f32 %v151, 0.9189385
    %v153 = vsub.f32 %v152, %v147
    %v154 = vlog2.pop %v146
    %v155 = vmul.f32 %v154, 0.6931472
    %v156 = vadd.f32 %v153, %v155
    %v157 = vsel %vm102, %v156, 0.0
    %158 = vadd.xlane.f32.xlu0 %v157
    %v159 = vpop.xlane.xlu0 %158
    %v160 = vrot.slane %v159, 4
    %v161 = vadd.f32 %v159, %v160
    %v162 = vrot.slane %v161, 2
    %v163 = vadd.f32 %v161, %v162
    %v164 = vrot.slane %v163, 1
    %v165 = vadd.f32 %v163, %v164
    %s166 = vtos %v165
    %v167 = vstv %s166
    %v168 = vsub.f32 %v113, %v167
    %v169 = vadd.f32 %v78, %v77
    %v170 = vsub.f32 %v169, 1.0
    %v171 = vadd.f32 %v170, 1.0
    %v172 = vrcp.pop %v171
    %v173 = vmul.f32 676.5204, %v172
    %v174 = vadd.f32 %v173, 1.0
    %v175 = vadd.f32 %v170, 2.0
    %v176 = vrcp.pop %v175
    %v177 = vmul.f32 -1259.1392, %v176
    %v178 = vadd.f32 %v174, %v177
    %v179 = vadd.f32 %v170, 3.0
    %v180 = vrcp.pop %v179
    %v181 = vmul.f32 771.3234, %v180
    %v182 = vadd.f32 %v178, %v181
    %v183 = vadd.f32 %v170, 4.0
    %v184 = vrcp.pop %v183
    %v185 = vmul.f32 -176.61504, %v184
    %v186 = vadd.f32 %v182, %v185
    %v187 = vadd.f32 %v170, 5.0
    %v188 = vrcp.pop %v187
    %v189 = vmul.f32 12.507343, %v188
    %v190 = vadd.f32 %v186, %v189
    %v191 = vadd.f32 %v170, 6.0
    %v192 = vrcp.pop %v191
    %v193 = vmul.f32 -0.1385711, %v192
    %v194 = vadd.f32 %v190, %v193
    %v195 = vadd.f32 %v170, 7.0
    %v196 = vrcp.pop %v195
    %v197 = vmul.f32 9.984369e-06, %v196
    %v198 = vadd.f32 %v194, %v197
    %v199 = vadd.f32 %v170, 8.0
    %v200 = vrcp.pop %v199
    %v201 = vmul.f32 1.5056327e-07, %v200
    %v202 = vadd.f32 %v198, %v201
    %v203 = vadd.f32 %v195, 0.5
    %v204 = vadd.f32 %v170, 0.5
    %v205 = vlog2.pop %v203
    %v206 = vmul.f32 %v205, 0.6931472
    %v207 = vmul.f32 %v204, %v206
    %v208 = vadd.f32 %v207, 0.9189385
    %v209 = vsub.f32 %v208, %v203
    %v210 = vlog2.pop %v202
    %v211 = vmul.f32 %v210, 0.6931472
    %v212 = vadd.f32 %v209, %v211
    %v213 = vsel %vm102, %v212, 0.0
    %214 = vadd.xlane.f32.xlu0 %v213
    %v215 = vpop.xlane.xlu0 %214
    %v216 = vrot.slane %v215, 4
    %v217 = vadd.f32 %v215, %v216
    %v218 = vrot.slane %v217, 2
    %v219 = vadd.f32 %v217, %v218
    %v220 = vrot.slane %v219, 1
    %v221 = vadd.f32 %v219, %v220
    %s222 = vtos %v221
    %v223 = vstv %s222
    %v224 = vadd.f32 %v168, %v223
    %v225 = vadd.f32 %v98, %v77
    %v226 = vlog2.pop %v225
    %v227 = vmul.f32 %v226, 0.6931472
    %v228 = vmul.f32 %v169, %v227
    %v229 = vsel %vm102, %v228, 0.0
    %230 = vadd.xlane.f32.xlu0 %v229
    %v231 = vpop.xlane.xlu0 %230
    %v232 = vrot.slane %v231, 4
    %v233 = vadd.f32 %v231, %v232
    %v234 = vrot.slane %v233, 2
    %v235 = vadd.f32 %v233, %v234
    %v236 = vrot.slane %v235, 1
    %v237 = vadd.f32 %v235, %v236
    %s238 = vtos %v237
    %v239 = vstv %s238
    %v240 = vsub.f32 %v224, %v239
    %v241 = vadd.f32 %v240, %v73
    %v242 = vmul.f32 %v78, %v94
    %v243 = vsel %vm102, %v242, 0.0
    %244 = vadd.xlane.f32.xlu0 %v243
    %v245 = vpop.xlane.xlu0 %244
    %v246 = vrot.slane %v245, 4
    %v247 = vadd.f32 %v245, %v246
    %v248 = vrot.slane %v247, 2
    %v249 = vadd.f32 %v247, %v248
    %v250 = vrot.slane %v249, 1
    %v251 = vadd.f32 %v249, %v250
    %s252 = vtos %v251
    %v253 = vstv %s252
    %v254 = vadd.f32 %v241, %v253
    %v255 = vsub.f32 0.0, %v254
    %vm256 = vcmask 0
    %257 = vst.msk [vmem:[#allocation3] sm:$0x1] %vm256, %v255
    // Predicated region
    $region26: #{glm_clustered_nb_neg_loglik.3} parent=1 // pred_check
      _
    $region27: #{glm_clustered_nb_neg_loglik.3} parent=1 // pred_check_branch
      %259 = sbr.rel (0) target = $region29
    $region28: #{glm_clustered_nb_neg_loglik.3} parent=1 // pred_region
      %s261 = ssub.s32 16, 16
      %262 = vsyncadd [#allocation4], %s261
      %s264 = sshll.u32 [#allocation3], 4
      %s265 = int_to_ptr.vmem [resolvable:$true] %s264
      %267 = dma.vmem_to_hbm [thread:$0]  %s265, 16, %s6, [#allocation4]
    $region29: #{glm_clustered_nb_neg_loglik.3} parent=1 // pred_fallthru
      _
    // Predicated region
    $region30: #{glm_clustered_nb_neg_loglik.3} parent=1 // pred_check
      _
    $region31: #{glm_clustered_nb_neg_loglik.3} parent=1 // pred_check_branch
      %269 = sbr.rel (0) target = $region33
    $region32: #{glm_clustered_nb_neg_loglik.3} parent=1 // pred_region
      %270 = dma.done [#allocation4], 16
    $region33: #{glm_clustered_nb_neg_loglik.3} parent=1 // pred_fallthru
      _
    %271 = vsyncpa [#allocation4], 1

</llo_original>
